<compile_context>
chip_gen: v5e
topology: v5e:2x2
jax: 0.10.0
libtpu: 0.0.40
codegen_flags: <defaults>
</compile_context>

<pallas_src>
import functools
import math

import jax
import jax.numpy as jnp
from jax import lax
from jax.experimental import pallas as pl
from jax.experimental.pallas import tpu as pltpu


def _round_up(n, m):
    return (n + m - 1) // m * m


# --------------------------- per-timestep LSTM cell --------------------------
def _lstm_step_fn(gi_ref, w_hh_ref, out_ref, B, H):
    """Build the lax.fori_loop body.

    gi_ref  : VMEM scratch (T*B, 4H) f32, precomputed x @ W_ih + (b_ih + b_hh)
    w_hh_ref: (H, 4H) bf16 recurrent weights, gate order [i, f, g, o]
    out_ref : (T*B, H) f32 hidden-sequence output, or None for the last layer
    """

    def step(t, carry):
        h, c = carry
        row = pl.multiple_of(t * B, B)        # sublane-aligned dynamic offset
        # Only matmul left on the sequential path.
        gh = jnp.dot(h.astype(jnp.bfloat16), w_hh_ref[...],
                     preferred_element_type=jnp.float32)
        g = gi_ref[pl.ds(row, B), :] + gh                     # (B, 4H) f32
        # H is a multiple of 128 -> lane-tile-aligned free slices.
        i_g = jax.nn.sigmoid(g[:, 0 * H:1 * H])
        f_g = jax.nn.sigmoid(g[:, 1 * H:2 * H])
        g_g = jnp.tanh(g[:, 2 * H:3 * H])
        o_g = jax.nn.sigmoid(g[:, 3 * H:4 * H])
        c_new = f_g * c + i_g * g_g
        h_new = o_g * jnp.tanh(c_new)
        if out_ref is not None:
            out_ref[pl.ds(row, B), :] = h_new                 # lane-dense store
        return h_new, c_new

    return step


# ------------------------------ layer kernels --------------------------------
def _lstm_layer_seq_kernel(x_ref, w_ih_ref, b_ref, w_hh_ref, out_ref, gi_ref,
                           *, T, B, H):
    # Hoisted, time-parallel input projection: one (T*B, I) @ (I, 4H) matmul.
    gi_ref[...] = (jnp.dot(x_ref[...], w_ih_ref[...],
                           preferred_element_type=jnp.float32) + b_ref[...])
    step = _lstm_step_fn(gi_ref, w_hh_ref, out_ref, B, H)
    zeros = jnp.zeros((B, H), jnp.float32)
    lax.fori_loop(0, T, step, (zeros, zeros), unroll=min(T, 8))


def _lstm_layer_last_kernel(x_ref, w_ih_ref, b_ref, w_hh_ref,
                            w_fc_ref, b_fc_ref, out_ref, gi_ref,
                            *, T, B, H):
    gi_ref[...] = (jnp.dot(x_ref[...], w_ih_ref[...],
                           preferred_element_type=jnp.float32) + b_ref[...])
    step = _lstm_step_fn(gi_ref, w_hh_ref, None, B, H)
    zeros = jnp.zeros((B, H), jnp.float32)
    h_T, _ = lax.fori_loop(0, T, step, (zeros, zeros), unroll=min(T, 8))
    # Fused FC head on the final hidden state (out[:, -1, :] @ W_fc + b_fc).
    out_ref[...] = (jnp.dot(h_T.astype(jnp.bfloat16), w_fc_ref[...],
                            preferred_element_type=jnp.float32) + b_fc_ref[...])


# ------------------------------ layer wrappers --------------------------------
def lstm_layer_seq(x2d, w_ih, b, w_hh, *, T, B):
    """x2d: (T*B, I) bf16 -> full hidden sequence (T*B, H) f32."""
    H = w_hh.shape[0]
    M = T * B
    kern = functools.partial(_lstm_layer_seq_kernel, T=T, B=B, H=H)
    return pl.pallas_call(
        kern,
        out_shape=jax.ShapeDtypeStruct((M, H), jnp.float32),
        scratch_shapes=[pltpu.VMEM((M, 4 * H), jnp.float32)],
    )(x2d, w_ih, b, w_hh)


def lstm_layer_last_fc(x2d, w_ih, b, w_hh, w_fc, b_fc, *, T, B):
    """Last layer: recurrence + fused FC head. Returns (B, O) f32."""
    H = w_hh.shape[0]
    O = w_fc.shape[1]
    M = T * B
    kern = functools.partial(_lstm_layer_last_kernel, T=T, B=B, H=H)
    return pl.pallas_call(
        kern,
        out_shape=jax.ShapeDtypeStruct((B, O), jnp.float32),
        scratch_shapes=[pltpu.VMEM((M, 4 * H), jnp.float32)],
    )(x2d, w_ih, b, w_hh, w_fc, b_fc)


# ------------------------------- parameters -----------------------------------
def init_params(key, input_size, hidden_size, num_layers, output_size):
    """Logical PyTorch-layout params: W_ih (4H,in), W_hh (4H,H), biases (4H,).
    Gate order is PyTorch's [i, f, g, o]; init U(-1/sqrt(H), 1/sqrt(H))."""
    params = {"lstm": [], "input_size": input_size,
              "hidden_size": hidden_size, "output_size": output_size}
    k = 1.0 / math.sqrt(hidden_size)
    for layer in range(num_layers):
        in_sz = input_size if layer == 0 else hidden_size
        key, k1, k2, k3, k4 = jax.random.split(key, 5)
        w_ih = jax.random.uniform(k1, (4 * hidden_size, in_sz), jnp.float32, -k, k)
        w_hh = jax.random.uniform(k2, (4 * hidden_size, hidden_size), jnp.float32, -k, k)
        b_ih = jax.random.uniform(k3, (4 * hidden_size,), jnp.float32, -k, k)
        b_hh = jax.random.uniform(k4, (4 * hidden_size,), jnp.float32, -k, k)
        params["lstm"].append((w_ih, w_hh, b_ih, b_hh))
    key, k5, k6 = jax.random.split(key, 3)
    params["fc_w"] = jax.random.uniform(k5, (output_size, hidden_size), jnp.float32, -k, k)
    params["fc_b"] = jax.random.uniform(k6, (output_size,), jnp.float32, -k, k)
    return params


def _pack_gate_weight(w, H, Hp, in_dim, Ip):
    """(4H, in) PyTorch layout -> (Ip, 4*Hp) transposed, gate-block padded, bf16."""
    w4 = w.reshape(4, H, in_dim)
    out = jnp.zeros((4, Hp, Ip), jnp.float32).at[:, :H, :in_dim].set(w4)
    return jnp.transpose(out, (2, 0, 1)).reshape(Ip, 4 * Hp).astype(jnp.bfloat16)


def _pack_gate_bias(b_ih, b_hh, H, Hp):
    b = (b_ih + b_hh).reshape(4, H)                   # pre-fuse b_ih + b_hh
    return jnp.zeros((4, Hp), jnp.float32).at[:, :H].set(b).reshape(1, 4 * Hp)


def pack_params(params):
    """Pad I/H/O to 128-lane multiples, pre-transpose, cast weights to bf16."""
    I = params["input_size"]
    H = params["hidden_size"]
    O = params["output_size"]
    Hp, Ip, Op = _round_up(H, 128), _round_up(I, 128), _round_up(O, 128)
    packed = {"layers": [], "Ip": Ip, "Hp": Hp, "Op": Op, "O": O}
    for li, (w_ih, w_hh, b_ih, b_hh) in enumerate(params["lstm"]):
        in_dim = I if li == 0 else H
        in_pad = Ip if li == 0 else Hp
        packed["layers"].append(dict(
            w_ih=_pack_gate_weight(w_ih, H, Hp, in_dim, in_pad),
            w_hh=_pack_gate_weight(w_hh, H, Hp, H, Hp),
            b=_pack_gate_bias(b_ih, b_hh, H, Hp)))
    w_fc = jnp.zeros((Hp, Op), jnp.float32).at[:H, :O].set(params["fc_w"].T)
    packed["w_fc"] = w_fc.astype(jnp.bfloat16)
    packed["b_fc"] = jnp.zeros((1, Op), jnp.float32).at[0, :O].set(params["fc_b"])
    return packed


# --------------------------------- forward ------------------------------------
def new_forward(packed, x):
    """x: (B, T, input_size) batch-first, like the PyTorch module."""
    x = x.astype(jnp.float32)
    B, T, I = x.shape
    Bp = _round_up(B, 8)                              # pad batch to a sublane
    Ip = packed["Ip"]
    x_tm = jnp.transpose(x, (1, 0, 2))                # (T, B, I) time-major
    x_pad = jnp.zeros((T, Bp, Ip), jnp.float32).at[:, :B, :I].set(x_tm)
    h2d = x_pad.reshape(T * Bp, Ip).astype(jnp.bfloat16)   # rows = T*Bp

    layers = packed["layers"]
    for layer in layers[:-1]:
        seq = lstm_layer_seq(h2d, layer["w_ih"], layer["b"], layer["w_hh"],
                             T=T, B=Bp)               # (T*Bp, Hp) f32
        h2d = seq.astype(jnp.bfloat16)

    last = layers[-1]
    out = lstm_layer_last_fc(h2d, last["w_ih"], last["b"], last["w_hh"],
                             packed["w_fc"], packed["b_fc"], T=T, B=Bp)
    return out[:B, :packed["O"]]


# ---------------------------- pure-JAX reference -------------------------------
def _ref_forward(params, x):
    x = x.astype(jnp.float32)
    H = params["hidden_size"]
    seq = jnp.transpose(x, (1, 0, 2))                 # (T, B, I)
    T, B, _ = seq.shape
    for (w_ih, w_hh, b_ih, b_hh) in params["lstm"]:
        wi = w_ih.T.astype(jnp.bfloat16)
        wh = w_hh.T.astype(jnp.bfloat16)
        b = (b_ih + b_hh)[None, :]
        h = jnp.zeros((B, H), jnp.float32)
        c = jnp.zeros((B, H), jnp.float32)
        outs = []
        for t in range(T):
            g = (jnp.dot(seq[t].astype(jnp.bfloat16), wi,
                         preferred_element_type=jnp.float32)
                 + jnp.dot(h.astype(jnp.bfloat16), wh,
                           preferred_element_type=jnp.float32) + b)
            i_g = jax.nn.sigmoid(g[:, 0 * H:1 * H])
            f_g = jax.nn.sigmoid(g[:, 1 * H:2 * H])
            g_g = jnp.tanh(g[:, 2 * H:3 * H])
            o_g = jax.nn.sigmoid(g[:, 3 * H:4 * H])
            c = f_g * c + i_g * g_g
            h = o_g * jnp.tanh(c)
            outs.append(h)
        seq = jnp.stack(outs, axis=0)
    return (jnp.dot(seq[-1].astype(jnp.bfloat16),
                    params["fc_w"].T.astype(jnp.bfloat16),
                    preferred_element_type=jnp.float32)
            + params["fc_b"][None, :])


if __name__ == "__main__":
    input_size, hidden_size, num_layers, output_size = 16, 32, 2, 8
    B, T = 2, 8

    key = jax.random.PRNGKey(0)
    key, pk, xk = jax.random.split(key, 3)
    params = init_params(pk, input_size, hidden_size, num_layers, output_size)
    packed = pack_params(params)
    x = jax.random.normal(xk, (B, T, input_size), jnp.float32)

    out = jax.block_until_ready(new_forward(packed, x))
    ref = jax.block_until_ready(_ref_forward(params, x))

    assert out.shape == (B, output_size), out.shape
    err = float(jnp.max(jnp.abs(out - ref)))
    assert jnp.allclose(out, ref, atol=5e-3, rtol=5e-3), f"mismatch vs reference (max abs err {err})"

    print("KERNEL_OK")
</pallas_src>

<mosaic_0001>
module attributes {stable_mosaic.version = 11 : i64} {
  func.func @_lstm_layer_seq_kernel(%arg0: memref<64x128xbf16, #tpu.memory_space<vmem>>, %arg1: memref<128x512xbf16, #tpu.memory_space<vmem>>, %arg2: memref<1x512xf32, #tpu.memory_space<vmem>>, %arg3: memref<128x512xbf16, #tpu.memory_space<vmem>>, %arg4: memref<64x128xf32, #tpu.memory_space<vmem>>, %arg5: memref<64x512xf32, #tpu.memory_space<vmem>>) attributes {dimension_semantics = [], scalar_prefetch = 0 : i64, scratch_operands = 1 : i64, tpu.core_type = #tpu.core_type<tc>} {
    %c0 = arith.constant 0 : index
    %c0_0 = arith.constant 0 : index
    %0 = vector.load %arg0[%c0, %c0_0] : memref<64x128xbf16, #tpu.memory_space<vmem>>, vector<64x128xbf16>
    %c0_1 = arith.constant 0 : index
    %c0_2 = arith.constant 0 : index
    %1 = vector.load %arg1[%c0_1, %c0_2] : memref<128x512xbf16, #tpu.memory_space<vmem>>, vector<128x512xbf16>
    %cst = arith.constant dense<0.000000e+00> : vector<64x512xf32>
    %2 = tpu.matmul %0, %1, %cst {dimension_numbers = #tpu.dot_dimension_numbers<[1], [0], [0], [1], [0, 0, 1, 1], [], []>} : vector<64x128xbf16>, vector<128x512xbf16>, vector<64x512xf32> -> vector<64x512xf32>
    %c0_3 = arith.constant 0 : index
    %c0_4 = arith.constant 0 : index
    %3 = vector.load %arg2[%c0_3, %c0_4] : memref<1x512xf32, #tpu.memory_space<vmem>>, vector<1x512xf32>
    %4 = vector.broadcast %3 : vector<1x512xf32> to vector<64x512xf32>
    %5 = arith.addf %2, %4 : vector<64x512xf32>
    %c0_5 = arith.constant 0 : index
    %c0_6 = arith.constant 0 : index
    %6 = vector.load %arg5[%c0_5, %c0_6] : memref<64x512xf32, #tpu.memory_space<vmem>>, vector<64x512xf32>
    tpu.vector_store %arg5[%c0_5, %c0_6], %5 {strides = array<i32>} : memref<64x512xf32, #tpu.memory_space<vmem>>, vector<64x512xf32>,
    %cst_7 = arith.constant 0.000000e+00 : f32
    %7 = vector.broadcast %cst_7 : f32 to vector<8x128xf32>
    %c0_i32 = arith.constant 0 : i32
    %c8_i32 = arith.constant 8 : i32
    %8 = arith.muli %c0_i32, %c8_i32 : i32
    %9 = tpu.assume_multiple %8, 8 : i32
    %10 = arith.truncf %7 : vector<8x128xf32> to vector<8x128xbf16>
    %c0_8 = arith.constant 0 : index
    %c0_9 = arith.constant 0 : index
    %11 = vector.load %arg3[%c0_8, %c0_9] : memref<128x512xbf16, #tpu.memory_space<vmem>>, vector<128x512xbf16>
    %cst_10 = arith.constant dense<0.000000e+00> : vector<8x512xf32>
    %12 = tpu.matmul %10, %11, %cst_10 {dimension_numbers = #tpu.dot_dimension_numbers<[1], [0], [0], [1], [0, 0, 1, 1], [], []>} : vector<8x128xbf16>, vector<128x512xbf16>, vector<8x512xf32> -> vector<8x512xf32>
    %13 = arith.index_cast %9 : i32 to index
    %c0_11 = arith.constant 0 : index
    %14 = vector.load %arg5[%13, %c0_11] : memref<64x512xf32, #tpu.memory_space<vmem>>, vector<8x512xf32>
    %15 = arith.addf %14, %12 : vector<8x512xf32>
    %16 = vector.extract_strided_slice %15 {offsets = [0, 0], sizes = [8, 128], strides = [1, 1]} : vector<8x512xf32> to vector<8x128xf32>
    %17 = arith.negf %16 : vector<8x128xf32>
    %18 = math.exp %17 : vector<8x128xf32>
    %cst_12 = arith.constant 1.000000e+00 : f32
    %19 = vector.broadcast %cst_12 : f32 to vector<8x128xf32>
    %20 = arith.addf %19, %18 : vector<8x128xf32>
    %21 = arith.divf %19, %20 : vector<8x128xf32>
    %22 = vector.extract_strided_slice %15 {offsets = [0, 128], sizes = [8, 128], strides = [1, 1]} : vector<8x512xf32> to vector<8x128xf32>
    %23 = arith.negf %22 : vector<8x128xf32>
    %24 = math.exp %23 : vector<8x128xf32>
    %cst_13 = arith.constant 1.000000e+00 : f32
    %25 = vector.broadcast %cst_13 : f32 to vector<8x128xf32>
    %26 = arith.addf %25, %24 : vector<8x128xf32>
    %27 = arith.divf %25, %26 : vector<8x128xf32>
    %28 = vector.extract_strided_slice %15 {offsets = [0, 256], sizes = [8, 128], strides = [1, 1]} : vector<8x512xf32> to vector<8x128xf32>
    %29 = math.tanh %28 : vector<8x128xf32>
    %30 = vector.extract_strided_slice %15 {offsets = [0, 384], sizes = [8, 128], strides = [1, 1]} : vector<8x512xf32> to vector<8x128xf32>
    %31 = arith.negf %30 : vector<8x128xf32>
    %32 = math.exp %31 : vector<8x128xf32>
    %cst_14 = arith.constant 1.000000e+00 : f32
    %33 = vector.broadcast %cst_14 : f32 to vector<8x128xf32>
    %34 = arith.addf %33, %32 : vector<8x128xf32>
    %35 = arith.divf %33, %34 : vector<8x128xf32>
    %36 = arith.mulf %27, %7 : vector<8x128xf32>
    %37 = arith.mulf %21, %29 : vector<8x128xf32>
    %38 = arith.addf %36, %37 : vector<8x128xf32>
    %39 = math.tanh %38 : vector<8x128xf32>
    %40 = arith.mulf %35, %39 : vector<8x128xf32>
    %41 = arith.index_cast %9 : i32 to index
    %c0_15 = arith.constant 0 : index
    %42 = vector.load %arg4[%41, %c0_15] : memref<64x128xf32, #tpu.memory_space<vmem>>, vector<8x128xf32>
    tpu.vector_store %arg4[%41, %c0_15], %40 {strides = array<i32>} : memref<64x128xf32, #tpu.memory_space<vmem>>, vector<8x128xf32>,
    %c1_i32 = arith.constant 1 : i32
    %c8_i32_16 = arith.constant 8 : i32
    %43 = arith.muli %c1_i32, %c8_i32_16 : i32
    %44 = tpu.assume_multiple %43, 8 : i32
    %45 = arith.truncf %40 : vector<8x128xf32> to vector<8x128xbf16>
    %c0_17 = arith.constant 0 : index
    %c0_18 = arith.constant 0 : index
    %46 = vector.load %arg3[%c0_17, %c0_18] : memref<128x512xbf16, #tpu.memory_space<vmem>>, vector<128x512xbf16>
    %cst_19 = arith.constant dense<0.000000e+00> : vector<8x512xf32>
    %47 = tpu.matmul %45, %46, %cst_19 {dimension_numbers = #tpu.dot_dimension_numbers<[1], [0], [0], [1], [0, 0, 1, 1], [], []>} : vector<8x128xbf16>, vector<128x512xbf16>, vector<8x512xf32> -> vector<8x512xf32>
    %48 = arith.index_cast %44 : i32 to index
    %c0_20 = arith.constant 0 : index
    %49 = vector.load %arg5[%48, %c0_20] : memref<64x512xf32, #tpu.memory_space<vmem>>, vector<8x512xf32>
    %50 = arith.addf %49, %47 : vector<8x512xf32>
    %51 = vector.extract_strided_slice %50 {offsets = [0, 0], sizes = [8, 128], strides = [1, 1]} : vector<8x512xf32> to vector<8x128xf32>
    %52 = arith.negf %51 : vector<8x128xf32>
    %53 = math.exp %52 : vector<8x128xf32>
    %cst_21 = arith.constant 1.000000e+00 : f32
    %54 = vector.broadcast %cst_21 : f32 to vector<8x128xf32>
    %55 = arith.addf %54, %53 : vector<8x128xf32>
    %56 = arith.divf %54, %55 : vector<8x128xf32>
    %57 = vector.extract_strided_slice %50 {offsets = [0, 128], sizes = [8, 128], strides = [1, 1]} : vector<8x512xf32> to vector<8x128xf32>
    %58 = arith.negf %57 : vector<8x128xf32>
    %59 = math.exp %58 : vector<8x128xf32>
    %cst_22 = arith.constant 1.000000e+00 : f32
    %60 = vector.broadcast %cst_22 : f32 to vector<8x128xf32>
    %61 = arith.addf %60, %59 : vector<8x128xf32>
    %62 = arith.divf %60, %61 : vector<8x128xf32>
    %63 = vector.extract_strided_slice %50 {offsets = [0, 256], sizes = [8, 128], strides = [1, 1]} : vector<8x512xf32> to vector<8x128xf32>
    %64 = math.tanh %63 : vector<8x128xf32>
    %65 = vector.extract_strided_slice %50 {offsets = [0, 384], sizes = [8, 128], strides = [1, 1]} : vector<8x512xf32> to vector<8x128xf32>
    %66 = arith.negf %65 : vector<8x128xf32>
    %67 = math.exp %66 : vector<8x128xf32>
    %cst_23 = arith.constant 1.000000e+00 : f32
    %68 = vector.broadcast %cst_23 : f32 to vector<8x128xf32>
    %69 = arith.addf %68, %67 : vector<8x128xf32>
    %70 = arith.divf %68, %69 : vector<8x128xf32>
    %71 = arith.mulf %62, %38 : vector<8x128xf32>
    %72 = arith.mulf %56, %64 : vector<8x128xf32>
    %73 = arith.addf %71, %72 : vector<8x128xf32>
    %74 = math.tanh %73 : vector<8x128xf32>
    %75 = arith.mulf %70, %74 : vector<8x128xf32>
    %76 = arith.index_cast %44 : i32 to index
    %c0_24 = arith.constant 0 : index
    %77 = vector.load %arg4[%76, %c0_24] : memref<64x128xf32, #tpu.memory_space<vmem>>, vector<8x128xf32>
    tpu.vector_store %arg4[%76, %c0_24], %75 {strides = array<i32>} : memref<64x128xf32, #tpu.memory_space<vmem>>, vector<8x128xf32>,
    %c2_i32 = arith.constant 2 : i32
    %c8_i32_25 = arith.constant 8 : i32
    %78 = arith.muli %c2_i32, %c8_i32_25 : i32
    %79 = tpu.assume_multiple %78, 8 : i32
    %80 = arith.truncf %75 : vector<8x128xf32> to vector<8x128xbf16>
    %c0_26 = arith.constant 0 : index
    %c0_27 = arith.constant 0 : index
    %81 = vector.load %arg3[%c0_26, %c0_27] : memref<128x512xbf16, #tpu.memory_space<vmem>>, vector<128x512xbf16>
    %cst_28 = arith.constant dense<0.000000e+00> : vector<8x512xf32>
    %82 = tpu.matmul %80, %81, %cst_28 {dimension_numbers = #tpu.dot_dimension_numbers<[1], [0], [0], [1], [0, 0, 1, 1], [], []>} : vector<8x128xbf16>, vector<128x512xbf16>, vector<8x512xf32> -> vector<8x512xf32>
    %83 = arith.index_cast %79 : i32 to index
    %c0_29 = arith.constant 0 : index
    %84 = vector.load %arg5[%83, %c0_29] : memref<64x512xf32, #tpu.memory_space<vmem>>, vector<8x512xf32>
    %85 = arith.addf %84, %82 : vector<8x512xf32>
    %86 = vector.extract_strided_slice %85 {offsets = [0, 0], sizes = [8, 128], strides = [1, 1]} : vector<8x512xf32> to vector<8x128xf32>
    %87 = arith.negf %86 : vector<8x128xf32>
    %88 = math.exp %87 : vector<8x128xf32>
    %cst_30 = arith.constant 1.000000e+00 : f32
    %89 = vector.broadcast %cst_30 : f32 to vector<8x128xf32>
    %90 = arith.addf %89, %88 : vector<8x128xf32>
    %91 = arith.divf %89, %90 : vector<8x128xf32>
    %92 = vector.extract_strided_slice %85 {offsets = [0, 128], sizes = [8, 128], strides = [1, 1]} : vector<8x512xf32> to vector<8x128xf32>
    %93 = arith.negf %92 : vector<8x128xf32>
    %94 = math.exp %93 : vector<8x128xf32>
    %cst_31 = arith.constant 1.000000e+00 : f32
    %95 = vector.broadcast %cst_31 : f32 to vector<8x128xf32>
    %96 = arith.addf %95, %94 : vector<8x128xf32>
    %97 = arith.divf %95, %96 : vector<8x128xf32>
    %98 = vector.extract_strided_slice %85 {offsets = [0, 256], sizes = [8, 128], strides = [1, 1]} : vector<8x512xf32> to vector<8x128xf32>
    %99 = math.tanh %98 : vector<8x128xf32>
    %100 = vector.extract_strided_slice %85 {offsets = [0, 384], sizes = [8, 128], strides = [1, 1]} : vector<8x512xf32> to vector<8x128xf32>
    %101 = arith.negf %100 : vector<8x128xf32>
    %102 = math.exp %101 : vector<8x128xf32>
    %cst_32 = arith.constant 1.000000e+00 : f32
    %103 = vector.broadcast %cst_32 : f32 to vector<8x128xf32>
    %104 = arith.addf %103, %102 : vector<8x128xf32>
    %105 = arith.divf %103, %104 : vector<8x128xf32>
    %106 = arith.mulf %97, %73 : vector<8x128xf32>
    %107 = arith.mulf %91, %99 : vector<8x128xf32>
    %108 = arith.addf %106, %107 : vector<8x128xf32>
    %109 = math.tanh %108 : vector<8x128xf32>
    %110 = arith.mulf %105, %109 : vector<8x128xf32>
    %111 = arith.index_cast %79 : i32 to index
    %c0_33 = arith.constant 0 : index
    %112 = vector.load %arg4[%111, %c0_33] : memref<64x128xf32, #tpu.memory_space<vmem>>, vector<8x128xf32>
    tpu.vector_store %arg4[%111, %c0_33], %110 {strides = array<i32>} : memref<64x128xf32, #tpu.memory_space<vmem>>, vector<8x128xf32>,
    %c3_i32 = arith.constant 3 : i32
    %c8_i32_34 = arith.constant 8 : i32
    %113 = arith.muli %c3_i32, %c8_i32_34 : i32
    %114 = tpu.assume_multiple %113, 8 : i32
    %115 = arith.truncf %110 : vector<8x128xf32> to vector<8x128xbf16>
    %c0_35 = arith.constant 0 : index
    %c0_36 = arith.constant 0 : index
    %116 = vector.load %arg3[%c0_35, %c0_36] : memref<128x512xbf16, #tpu.memory_space<vmem>>, vector<128x512xbf16>
    %cst_37 = arith.constant dense<0.000000e+00> : vector<8x512xf32>
    %117 = tpu.matmul %115, %116, %cst_37 {dimension_numbers = #tpu.dot_dimension_numbers<[1], [0], [0], [1], [0, 0, 1, 1], [], []>} : vector<8x128xbf16>, vector<128x512xbf16>, vector<8x512xf32> -> vector<8x512xf32>
    %118 = arith.index_cast %114 : i32 to index
    %c0_38 = arith.constant 0 : index
    %119 = vector.load %arg5[%118, %c0_38] : memref<64x512xf32, #tpu.memory_space<vmem>>, vector<8x512xf32>
    %120 = arith.addf %119, %117 : vector<8x512xf32>
    %121 = vector.extract_strided_slice %120 {offsets = [0, 0], sizes = [8, 128], strides = [1, 1]} : vector<8x512xf32> to vector<8x128xf32>
    %122 = arith.negf %121 : vector<8x128xf32>
    %123 = math.exp %122 : vector<8x128xf32>
    %cst_39 = arith.constant 1.000000e+00 : f32
    %124 = vector.broadcast %cst_39 : f32 to vector<8x128xf32>
    %125 = arith.addf %124, %123 : vector<8x128xf32>
    %126 = arith.divf %124, %125 : vector<8x128xf32>
    %127 = vector.extract_strided_slice %120 {offsets = [0, 128], sizes = [8, 128], strides = [1, 1]} : vector<8x512xf32> to vector<8x128xf32>
    %128 = arith.negf %127 : vector<8x128xf32>
    %129 = math.exp %128 : vector<8x128xf32>
    %cst_40 = arith.constant 1.000000e+00 : f32
    %130 = vector.broadcast %cst_40 : f32 to vector<8x128xf32>
    %131 = arith.addf %130, %129 : vector<8x128xf32>
    %132 = arith.divf %130, %131 : vector<8x128xf32>
    %133 = vector.extract_strided_slice %120 {offsets = [0, 256], sizes = [8, 128], strides = [1, 1]} : vector<8x512xf32> to vector<8x128xf32>
    %134 = math.tanh %133 : vector<8x128xf32>
    %135 = vector.extract_strided_slice %120 {offsets = [0, 384], sizes = [8, 128], strides = [1, 1]} : vector<8x512xf32> to vector<8x128xf32>
    %136 = arith.negf %135 : vector<8x128xf32>
    %137 = math.exp %136 : vector<8x128xf32>
    %cst_41 = arith.constant 1.000000e+00 : f32
    %138 = vector.broadcast %cst_41 : f32 to vector<8x128xf32>
    %139 = arith.addf %138, %137 : vector<8x128xf32>
    %140 = arith.divf %138, %139 : vector<8x128xf32>
    %141 = arith.mulf %132, %108 : vector<8x128xf32>
    %142 = arith.mulf %126, %134 : vector<8x128xf32>
    %143 = arith.addf %141, %142 : vector<8x128xf32>
    %144 = math.tanh %143 : vector<8x128xf32>
    %145 = arith.mulf %140, %144 : vector<8x128xf32>
    %146 = arith.index_cast %114 : i32 to index
    %c0_42 = arith.constant 0 : index
    %147 = vector.load %arg4[%146, %c0_42] : memref<64x128xf32, #tpu.memory_space<vmem>>, vector<8x128xf32>
    tpu.vector_store %arg4[%146, %c0_42], %145 {strides = array<i32>} : memref<64x128xf32, #tpu.memory_space<vmem>>, vector<8x128xf32>,
    %c4_i32 = arith.constant 4 : i32
    %c8_i32_43 = arith.constant 8 : i32
    %148 = arith.muli %c4_i32, %c8_i32_43 : i32
    %149 = tpu.assume_multiple %148, 8 : i32
    %150 = arith.truncf %145 : vector<8x128xf32> to vector<8x128xbf16>
    %c0_44 = arith.constant 0 : index
    %c0_45 = arith.constant 0 : index
    %151 = vector.load %arg3[%c0_44, %c0_45] : memref<128x512xbf16, #tpu.memory_space<vmem>>, vector<128x512xbf16>
    %cst_46 = arith.constant dense<0.000000e+00> : vector<8x512xf32>
    %152 = tpu.matmul %150, %151, %cst_46 {dimension_numbers = #tpu.dot_dimension_numbers<[1], [0], [0], [1], [0, 0, 1, 1], [], []>} : vector<8x128xbf16>, vector<128x512xbf16>, vector<8x512xf32> -> vector<8x512xf32>
    %153 = arith.index_cast %149 : i32 to index
    %c0_47 = arith.constant 0 : index
    %154 = vector.load %arg5[%153, %c0_47] : memref<64x512xf32, #tpu.memory_space<vmem>>, vector<8x512xf32>
    %155 = arith.addf %154, %152 : vector<8x512xf32>
    %156 = vector.extract_strided_slice %155 {offsets = [0, 0], sizes = [8, 128], strides = [1, 1]} : vector<8x512xf32> to vector<8x128xf32>
    %157 = arith.negf %156 : vector<8x128xf32>
    %158 = math.exp %157 : vector<8x128xf32>
    %cst_48 = arith.constant 1.000000e+00 : f32
    %159 = vector.broadcast %cst_48 : f32 to vector<8x128xf32>
    %160 = arith.addf %159, %158 : vector<8x128xf32>
    %161 = arith.divf %159, %160 : vector<8x128xf32>
    %162 = vector.extract_strided_slice %155 {offsets = [0, 128], sizes = [8, 128], strides = [1, 1]} : vector<8x512xf32> to vector<8x128xf32>
    %163 = arith.negf %162 : vector<8x128xf32>
    %164 = math.exp %163 : vector<8x128xf32>
    %cst_49 = arith.constant 1.000000e+00 : f32
    %165 = vector.broadcast %cst_49 : f32 to vector<8x128xf32>
    %166 = arith.addf %165, %164 : vector<8x128xf32>
    %167 = arith.divf %165, %166 : vector<8x128xf32>
    %168 = vector.extract_strided_slice %155 {offsets = [0, 256], sizes = [8, 128], strides = [1, 1]} : vector<8x512xf32> to vector<8x128xf32>
    %169 = math.tanh %168 : vector<8x128xf32>
    %170 = vector.extract_strided_slice %155 {offsets = [0, 384], sizes = [8, 128], strides = [1, 1]} : vector<8x512xf32> to vector<8x128xf32>
    %171 = arith.negf %170 : vector<8x128xf32>
    %172 = math.exp %171 : vector<8x128xf32>
    %cst_50 = arith.constant 1.000000e+00 : f32
    %173 = vector.broadcast %cst_50 : f32 to vector<8x128xf32>
    %174 = arith.addf %173, %172 : vector<8x128xf32>
    %175 = arith.divf %173, %174 : vector<8x128xf32>
    %176 = arith.mulf %167, %143 : vector<8x128xf32>
    %177 = arith.mulf %161, %169 : vector<8x128xf32>
    %178 = arith.addf %176, %177 : vector<8x128xf32>
    %179 = math.tanh %178 : vector<8x128xf32>
    %180 = arith.mulf %175, %179 : vector<8x128xf32>
    %181 = arith.index_cast %149 : i32 to index
    %c0_51 = arith.constant 0 : index
    %182 = vector.load %arg4[%181, %c0_51] : memref<64x128xf32, #tpu.memory_space<vmem>>, vector<8x128xf32>
    tpu.vector_store %arg4[%181, %c0_51], %180 {strides = array<i32>} : memref<64x128xf32, #tpu.memory_space<vmem>>, vector<8x128xf32>,
    %c5_i32 = arith.constant 5 : i32
    %c8_i32_52 = arith.constant 8 : i32
    %183 = arith.muli %c5_i32, %c8_i32_52 : i32
    %184 = tpu.assume_multiple %183, 8 : i32
    %185 = arith.truncf %180 : vector<8x128xf32> to vector<8x128xbf16>
    %c0_53 = arith.constant 0 : index
    %c0_54 = arith.constant 0 : index
    %186 = vector.load %arg3[%c0_53, %c0_54] : memref<128x512xbf16, #tpu.memory_space<vmem>>, vector<128x512xbf16>
    %cst_55 = arith.constant dense<0.000000e+00> : vector<8x512xf32>
    %187 = tpu.matmul %185, %186, %cst_55 {dimension_numbers = #tpu.dot_dimension_numbers<[1], [0], [0], [1], [0, 0, 1, 1], [], []>} : vector<8x128xbf16>, vector<128x512xbf16>, vector<8x512xf32> -> vector<8x512xf32>
    %188 = arith.index_cast %184 : i32 to index
    %c0_56 = arith.constant 0 : index
    %189 = vector.load %arg5[%188, %c0_56] : memref<64x512xf32, #tpu.memory_space<vmem>>, vector<8x512xf32>
    %190 = arith.addf %189, %187 : vector<8x512xf32>
    %191 = vector.extract_strided_slice %190 {offsets = [0, 0], sizes = [8, 128], strides = [1, 1]} : vector<8x512xf32> to vector<8x128xf32>
    %192 = arith.negf %191 : vector<8x128xf32>
    %193 = math.exp %192 : vector<8x128xf32>
    %cst_57 = arith.constant 1.000000e+00 : f32
    %194 = vector.broadcast %cst_57 : f32 to vector<8x128xf32>
    %195 = arith.addf %194, %193 : vector<8x128xf32>
    %196 = arith.divf %194, %195 : vector<8x128xf32>
    %197 = vector.extract_strided_slice %190 {offsets = [0, 128], sizes = [8, 128], strides = [1, 1]} : vector<8x512xf32> to vector<8x128xf32>
    %198 = arith.negf %197 : vector<8x128xf32>
    %199 = math.exp %198 : vector<8x128xf32>
    %cst_58 = arith.constant 1.000000e+00 : f32
    %200 = vector.broadcast %cst_58 : f32 to vector<8x128xf32>
    %201 = arith.addf %200, %199 : vector<8x128xf32>
    %202 = arith.divf %200, %201 : vector<8x128xf32>
    %203 = vector.extract_strided_slice %190 {offsets = [0, 256], sizes = [8, 128], strides = [1, 1]} : vector<8x512xf32> to vector<8x128xf32>
    %204 = math.tanh %203 : vector<8x128xf32>
    %205 = vector.extract_strided_slice %190 {offsets = [0, 384], sizes = [8, 128], strides = [1, 1]} : vector<8x512xf32> to vector<8x128xf32>
    %206 = arith.negf %205 : vector<8x128xf32>
    %207 = math.exp %206 : vector<8x128xf32>
    %cst_59 = arith.constant 1.000000e+00 : f32
    %208 = vector.broadcast %cst_59 : f32 to vector<8x128xf32>
    %209 = arith.addf %208, %207 : vector<8x128xf32>
    %210 = arith.divf %208, %209 : vector<8x128xf32>
    %211 = arith.mulf %202, %178 : vector<8x128xf32>
    %212 = arith.mulf %196, %204 : vector<8x128xf32>
    %213 = arith.addf %211, %212 : vector<8x128xf32>
    %214 = math.tanh %213 : vector<8x128xf32>
    %215 = arith.mulf %210, %214 : vector<8x128xf32>
    %216 = arith.index_cast %184 : i32 to index
    %c0_60 = arith.constant 0 : index
    %217 = vector.load %arg4[%216, %c0_60] : memref<64x128xf32, #tpu.memory_space<vmem>>, vector<8x128xf32>
    tpu.vector_store %arg4[%216, %c0_60], %215 {strides = array<i32>} : memref<64x128xf32, #tpu.memory_space<vmem>>, vector<8x128xf32>,
    %c6_i32 = arith.constant 6 : i32
    %c8_i32_61 = arith.constant 8 : i32
    %218 = arith.muli %c6_i32, %c8_i32_61 : i32
    %219 = tpu.assume_multiple %218, 8 : i32
    %220 = arith.truncf %215 : vector<8x128xf32> to vector<8x128xbf16>
    %c0_62 = arith.constant 0 : index
    %c0_63 = arith.constant 0 : index
    %221 = vector.load %arg3[%c0_62, %c0_63] : memref<128x512xbf16, #tpu.memory_space<vmem>>, vector<128x512xbf16>
    %cst_64 = arith.constant dense<0.000000e+00> : vector<8x512xf32>
    %222 = tpu.matmul %220, %221, %cst_64 {dimension_numbers = #tpu.dot_dimension_numbers<[1], [0], [0], [1], [0, 0, 1, 1], [], []>} : vector<8x128xbf16>, vector<128x512xbf16>, vector<8x512xf32> -> vector<8x512xf32>
    %223 = arith.index_cast %219 : i32 to index
    %c0_65 = arith.constant 0 : index
    %224 = vector.load %arg5[%223, %c0_65] : memref<64x512xf32, #tpu.memory_space<vmem>>, vector<8x512xf32>
    %225 = arith.addf %224, %222 : vector<8x512xf32>
    %226 = vector.extract_strided_slice %225 {offsets = [0, 0], sizes = [8, 128], strides = [1, 1]} : vector<8x512xf32> to vector<8x128xf32>
    %227 = arith.negf %226 : vector<8x128xf32>
    %228 = math.exp %227 : vector<8x128xf32>
    %cst_66 = arith.constant 1.000000e+00 : f32
    %229 = vector.broadcast %cst_66 : f32 to vector<8x128xf32>
    %230 = arith.addf %229, %228 : vector<8x128xf32>
    %231 = arith.divf %229, %230 : vector<8x128xf32>
    %232 = vector.extract_strided_slice %225 {offsets = [0, 128], sizes = [8, 128], strides = [1, 1]} : vector<8x512xf32> to vector<8x128xf32>
    %233 = arith.negf %232 : vector<8x128xf32>
    %234 = math.exp %233 : vector<8x128xf32>
    %cst_67 = arith.constant 1.000000e+00 : f32
    %235 = vector.broadcast %cst_67 : f32 to vector<8x128xf32>
    %236 = arith.addf %235, %234 : vector<8x128xf32>
    %237 = arith.divf %235, %236 : vector<8x128xf32>
    %238 = vector.extract_strided_slice %225 {offsets = [0, 256], sizes = [8, 128], strides = [1, 1]} : vector<8x512xf32> to vector<8x128xf32>
    %239 = math.tanh %238 : vector<8x128xf32>
    %240 = vector.extract_strided_slice %225 {offsets = [0, 384], sizes = [8, 128], strides = [1, 1]} : vector<8x512xf32> to vector<8x128xf32>
    %241 = arith.negf %240 : vector<8x128xf32>
    %242 = math.exp %241 : vector<8x128xf32>
    %cst_68 = arith.constant 1.000000e+00 : f32
    %243 = vector.broadcast %cst_68 : f32 to vector<8x128xf32>
    %244 = arith.addf %243, %242 : vector<8x128xf32>
    %245 = arith.divf %243, %244 : vector<8x128xf32>
    %246 = arith.mulf %237, %213 : vector<8x128xf32>
    %247 = arith.mulf %231, %239 : vector<8x128xf32>
    %248 = arith.addf %246, %247 : vector<8x128xf32>
    %249 = math.tanh %248 : vector<8x128xf32>
    %250 = arith.mulf %245, %249 : vector<8x128xf32>
    %251 = arith.index_cast %219 : i32 to index
    %c0_69 = arith.constant 0 : index
    %252 = vector.load %arg4[%251, %c0_69] : memref<64x128xf32, #tpu.memory_space<vmem>>, vector<8x128xf32>
    tpu.vector_store %arg4[%251, %c0_69], %250 {strides = array<i32>} : memref<64x128xf32, #tpu.memory_space<vmem>>, vector<8x128xf32>,
    %c7_i32 = arith.constant 7 : i32
    %c8_i32_70 = arith.constant 8 : i32
    %253 = arith.muli %c7_i32, %c8_i32_70 : i32
    %254 = tpu.assume_multiple %253, 8 : i32
    %255 = arith.truncf %250 : vector<8x128xf32> to vector<8x128xbf16>
    %c0_71 = arith.constant 0 : index
    %c0_72 = arith.constant 0 : index
    %256 = vector.load %arg3[%c0_71, %c0_72] : memref<128x512xbf16, #tpu.memory_space<vmem>>, vector<128x512xbf16>
    %cst_73 = arith.constant dense<0.000000e+00> : vector<8x512xf32>
    %257 = tpu.matmul %255, %256, %cst_73 {dimension_numbers = #tpu.dot_dimension_numbers<[1], [0], [0], [1], [0, 0, 1, 1], [], []>} : vector<8x128xbf16>, vector<128x512xbf16>, vector<8x512xf32> -> vector<8x512xf32>
    %258 = arith.index_cast %254 : i32 to index
    %c0_74 = arith.constant 0 : index
    %259 = vector.load %arg5[%258, %c0_74] : memref<64x512xf32, #tpu.memory_space<vmem>>, vector<8x512xf32>
    %260 = arith.addf %259, %257 : vector<8x512xf32>
    %261 = vector.extract_strided_slice %260 {offsets = [0, 0], sizes = [8, 128], strides = [1, 1]} : vector<8x512xf32> to vector<8x128xf32>
    %262 = arith.negf %261 : vector<8x128xf32>
    %263 = math.exp %262 : vector<8x128xf32>
    %cst_75 = arith.constant 1.000000e+00 : f32
    %264 = vector.broadcast %cst_75 : f32 to vector<8x128xf32>
    %265 = arith.addf %264, %263 : vector<8x128xf32>
    %266 = arith.divf %264, %265 : vector<8x128xf32>
    %267 = vector.extract_strided_slice %260 {offsets = [0, 128], sizes = [8, 128], strides = [1, 1]} : vector<8x512xf32> to vector<8x128xf32>
    %268 = arith.negf %267 : vector<8x128xf32>
    %269 = math.exp %268 : vector<8x128xf32>
    %cst_76 = arith.constant 1.000000e+00 : f32
    %270 = vector.broadcast %cst_76 : f32 to vector<8x128xf32>
    %271 = arith.addf %270, %269 : vector<8x128xf32>
    %272 = arith.divf %270, %271 : vector<8x128xf32>
    %273 = vector.extract_strided_slice %260 {offsets = [0, 256], sizes = [8, 128], strides = [1, 1]} : vector<8x512xf32> to vector<8x128xf32>
    %274 = math.tanh %273 : vector<8x128xf32>
    %275 = vector.extract_strided_slice %260 {offsets = [0, 384], sizes = [8, 128], strides = [1, 1]} : vector<8x512xf32> to vector<8x128xf32>
    %276 = arith.negf %275 : vector<8x128xf32>
    %277 = math.exp %276 : vector<8x128xf32>
    %cst_77 = arith.constant 1.000000e+00 : f32
    %278 = vector.broadcast %cst_77 : f32 to vector<8x128xf32>
    %279 = arith.addf %278, %277 : vector<8x128xf32>
    %280 = arith.divf %278, %279 : vector<8x128xf32>
    %281 = arith.mulf %272, %248 : vector<8x128xf32>
    %282 = arith.mulf %266, %274 : vector<8x128xf32>
    %283 = arith.addf %281, %282 : vector<8x128xf32>
    %284 = math.tanh %283 : vector<8x128xf32>
    %285 = arith.mulf %280, %284 : vector<8x128xf32>
    %286 = arith.index_cast %254 : i32 to index
    %c0_78 = arith.constant 0 : index
    %287 = vector.load %arg4[%286, %c0_78] : memref<64x128xf32, #tpu.memory_space<vmem>>, vector<8x128xf32>
    tpu.vector_store %arg4[%286, %c0_78], %285 {strides = array<i32>} : memref<64x128xf32, #tpu.memory_space<vmem>>, vector<8x128xf32>,
    %c8_i32_79 = arith.constant 8 : i32
    return
  }
}

</mosaic_0001>

<llo_original>
// kernel: tpu_custom_call.1
$region0: #{tpu_custom_call.1}
  #allocation0 [shape = 'u32[]', space=smem, size = 0x4, offset = 0x4, fixed_abs, tag = 'smem constant byte address 0x4 - core index']
  #allocation1 [shape = 'u32[72,128]{1,0:T(1,128)}', space=vmem, size = 0x9000, scoped, tag = 'internal scratch']
  #allocation2 [shape = 'f32[64,512]{1,0:T(8,128)}', space=vmem, size = 0x20000, scoped, tag = 'scratch operand']
  %s0 = inlined_call_operand.hbm [shape: bf16[64,128], index: 0, kind: input, shape index: {}]
  %s1 = inlined_call_operand.hbm [shape: bf16[128,512], index: 1, kind: input, shape index: {}]
  %s2 = inlined_call_operand.hbm [shape: f32[1,512], index: 2, kind: input, shape index: {}]
  %s3 = inlined_call_operand.hbm [shape: bf16[128,512], index: 3, kind: input, shape index: {}]
  %s4 = inlined_call_operand.hbm [shape: f32[64,128], index: 4, kind: output, shape index: {}]
  %s5 = sld [smem:[#allocation0]]
  $region42: #{tpu_custom_call.1} parent=0
    _
  %s7 = ssub.s32 1, %s5
  %s8 = scalar_select 0, %s7, %s5
  $region1: #{tpu_custom_call.1} parent=0
    #allocation3 [shape = 'u8[16384]{0}', space=vmem, size = 0x4000, scoped, tag = 'input window, operand 0, single buffered']
    #allocation4 [shape = 's32[1]{0}', space=sflag, size = 0x4, scoped, tag = 'scoped memory for tpu_custom_call.1']
    #allocation5 [shape = 's32[1]{0}', space=sflag, size = 0x4, scoped, tag = 'scoped memory for tpu_custom_call.1']
    #allocation6 [shape = 'u8[131072]{0}', space=vmem, size = 0x20000, scoped, tag = 'input window, operand 1, single buffered']
    #allocation7 [shape = 's32[1]{0}', space=sflag, size = 0x4, scoped, tag = 'scoped memory for tpu_custom_call.1']
    #allocation8 [shape = 'u8[2048]{0}', space=vmem, size = 0x800, scoped, tag = 'input window, operand 2, single buffered']
    #allocation9 [shape = 'u8[131072]{0}', space=vmem, size = 0x20000, scoped, tag = 'input window, operand 3, single buffered']
    #allocation10 [shape = 's32[1]{0}', space=sflag, size = 0x4, scoped, tag = 'scoped memory for tpu_custom_call.1']
    #allocation11 [shape = 'u8[32768]{0}', space=vmem, size = 0x8000, scoped, tag = 'output window, operand 0, single buffered']
    %9 = vsyncpa [#allocation4], 0
    %10 = vsyncpa [#allocation7], 0
    %11 = vsyncpa [#allocation10], 0
    %12 = vsyncpa [#allocation5], 0
    // Predicated region
    $region2: #{tpu_custom_call.1} parent=1 // pred_check
      _
    $region3: #{tpu_custom_call.1} parent=1 // pred_check_branch
      %14 = sbr.rel (0) target = $region5
    $region4: #{tpu_custom_call.1} parent=1 // pred_region
      %16 = vsyncadd [#allocation4], 0
      %s17 = sshll.u32 %s0, 4
      %s18 = int_to_ptr.hbm [resolvable:$true] %s17
      %s19 = sshll.u32 [#allocation3], 4
      %s20 = int_to_ptr.vmem [resolvable:$true] %s19
      %25 = dma.hbm_to_vmem [thread:$0]  %s18, 512, %s20, [#allocation4], 64, 64, 4
    $region5: #{tpu_custom_call.1} parent=1 // pred_fallthru
      _
    // Predicated region
    $region6: #{tpu_custom_call.1} parent=1 // pred_check
      _
    $region7: #{tpu_custom_call.1} parent=1 // pred_check_branch
      %27 = sbr.rel (0) target = $region9
    $region8: #{tpu_custom_call.1} parent=1 // pred_region
      %29 = vsyncadd [#allocation7], 0
      %s30 = sshll.u32 %s1, 4
      %s31 = int_to_ptr.hbm [resolvable:$true] %s30
      %s32 = sshll.u32 [#allocation6], 4
      %s33 = int_to_ptr.vmem [resolvable:$true] %s32
      %38 = dma.hbm_to_vmem [thread:$0]  %s31, 4096, %s33, [#allocation7], 256, 256, 16
    $region9: #{tpu_custom_call.1} parent=1 // pred_fallthru
      _
    // Predicated region
    $region10: #{tpu_custom_call.1} parent=1 // pred_check
      _
    $region11: #{tpu_custom_call.1} parent=1 // pred_check_branch
      %40 = sbr.rel (0) target = $region13
    $region12: #{tpu_custom_call.1} parent=1 // pred_region
      %42 = vsyncadd [#allocation7], 0
      %s44 = sshll.u32 %s2, 4
      %s45 = int_to_ptr.hbm [resolvable:$true] %s44
      %s46 = sshll.u32 [#allocation8], 4
      %s47 = int_to_ptr.vmem [resolvable:$true] %s46
      %49 = dma.hbm_to_vmem [thread:$0]  %s45, 64, %s47, [#allocation7]
    $region13: #{tpu_custom_call.1} parent=1 // pred_fallthru
      _
    // Predicated region
    $region14: #{tpu_custom_call.1} parent=1 // pred_check
      _
    $region15: #{tpu_custom_call.1} parent=1 // pred_check_branch
      %51 = sbr.rel (0) target = $region17
    $region16: #{tpu_custom_call.1} parent=1 // pred_region
      %53 = vsyncadd [#allocation10], 0
      %s54 = sshll.u32 %s3, 4
      %s55 = int_to_ptr.hbm [resolvable:$true] %s54
      %s56 = sshll.u32 [#allocation9], 4
      %s57 = int_to_ptr.vmem [resolvable:$true] %s56
      %62 = dma.hbm_to_vmem [thread:$0]  %s55, 4096, %s57, [#allocation10], 256, 256, 16
    $region17: #{tpu_custom_call.1} parent=1 // pred_fallthru
      _
    // Predicated region
    $region18: #{tpu_custom_call.1} parent=1 // pred_check
      _
    $region19: #{tpu_custom_call.1} parent=1 // pred_check_branch
      %64 = sbr.rel (0) target = $region21
    $region20: #{tpu_custom_call.1} parent=1 // pred_region
      %66 = dma.done [#allocation4], 512
    $region21: #{tpu_custom_call.1} parent=1 // pred_fallthru
      _
    // Predicated region
    $region22: #{tpu_custom_call.1} parent=1 // pred_check
      _
    $region23: #{tpu_custom_call.1} parent=1 // pred_check_branch
      %68 = sbr.rel (0) target = $region25
    $region24: #{tpu_custom_call.1} parent=1 // pred_region
      %70 = dma.done [#allocation7], 4096
    $region25: #{tpu_custom_call.1} parent=1 // pred_fallthru
      _
    // Predicated region
    $region26: #{tpu_custom_call.1} parent=1 // pred_check
      _
    $region27: #{tpu_custom_call.1} parent=1 // pred_check_branch
      %72 = sbr.rel (0) target = $region29
    $region28: #{tpu_custom_call.1} parent=1 // pred_region
      %74 = dma.done [#allocation7], 64
    $region29: #{tpu_custom_call.1} parent=1 // pred_fallthru
      _
    // Predicated region
    $region30: #{tpu_custom_call.1} parent=1 // pred_check
      _
    $region31: #{tpu_custom_call.1} parent=1 // pred_check_branch
      %76 = sbr.rel (0) target = $region33
    $region32: #{tpu_custom_call.1} parent=1 // pred_region
      %78 = dma.done [#allocation10], 4096
    $region33: #{tpu_custom_call.1} parent=1 // pred_fallthru
      _
    %v80 = vld [vmem:[#allocation3] sm:$0xf]
    %v81 = vld [vmem:[#allocation3 + $0x4] sm:$0xf]
    %v82 = vld [vmem:[#allocation3 + $0x8] sm:$0xf]
    %v83 = vld [vmem:[#allocation3 + $0xc] sm:$0xf]
    %v84 = vld [vmem:[#allocation3 + $0x10] sm:$0xf]
    %v85 = vld [vmem:[#allocation3 + $0x14] sm:$0xf]
    %v86 = vld [vmem:[#allocation3 + $0x18] sm:$0xf]
    %v87 = vld [vmem:[#allocation3 + $0x1c] sm:$0xf]
    %v88 = vld [vmem:[#allocation6] sm:$0xff]
    %v89 = vld [vmem:[#allocation6 + $0x8] sm:$0xff]
    %v90 = vld [vmem:[#allocation6 + $0x10] sm:$0xff]
    %v91 = vld [vmem:[#allocation6 + $0x18] sm:$0xff]
    %v92 = vld [vmem:[#allocation6 + $0x20] sm:$0xff]
    %v93 = vld [vmem:[#allocation6 + $0x28] sm:$0xff]
    %v94 = vld [vmem:[#allocation6 + $0x30] sm:$0xff]
    %v95 = vld [vmem:[#allocation6 + $0x38] sm:$0xff]
    %v96 = vld [vmem:[#allocation6 + $0x40] sm:$0xff]
    %v97 = vld [vmem:[#allocation6 + $0x48] sm:$0xff]
    %v98 = vld [vmem:[#allocation6 + $0x50] sm:$0xff]
    %v99 = vld [vmem:[#allocation6 + $0x58] sm:$0xff]
    %v100 = vld [vmem:[#allocation6 + $0x60] sm:$0xff]
    %v101 = vld [vmem:[#allocation6 + $0x68] sm:$0xff]
    %v102 = vld [vmem:[#allocation6 + $0x70] sm:$0xff]
    %v103 = vld [vmem:[#allocation6 + $0x78] sm:$0xff]
    %v104 = vld [vmem:[#allocation6 + $0x80] sm:$0xff]
    %v105 = vld [vmem:[#allocation6 + $0x88] sm:$0xff]
    %v106 = vld [vmem:[#allocation6 + $0x90] sm:$0xff]
    %v107 = vld [vmem:[#allocation6 + $0x98] sm:$0xff]
    %v108 = vld [vmem:[#allocation6 + $0xa0] sm:$0xff]
    %v109 = vld [vmem:[#allocation6 + $0xa8] sm:$0xff]
    %v110 = vld [vmem:[#allocation6 + $0xb0] sm:$0xff]
    %v111 = vld [vmem:[#allocation6 + $0xb8] sm:$0xff]
    %v112 = vld [vmem:[#allocation6 + $0xc0] sm:$0xff]
    %v113 = vld [vmem:[#allocation6 + $0xc8] sm:$0xff]
    %v114 = vld [vmem:[#allocation6 + $0xd0] sm:$0xff]
    %v115 = vld [vmem:[#allocation6 + $0xd8] sm:$0xff]
    %v116 = vld [vmem:[#allocation6 + $0xe0] sm:$0xff]
    %v117 = vld [vmem:[#allocation6 + $0xe8] sm:$0xff]
    %v118 = vld [vmem:[#allocation6 + $0xf0] sm:$0xff]
    %v119 = vld [vmem:[#allocation6 + $0xf8] sm:$0xff]
    %v120 = vld [vmem:[#allocation8] sm:$0xf]
    %v122 = vperm.slane %v120, 0
    %v123 = vperm.slane %v120, 1
    %v124 = vperm.slane %v120, 2
    %v125 = vperm.slane %v120, 3
    %v138 = vunpack.c.l.b16 %v80
    %v139 = vunpack.c.l.b16 %v81
    %v140 = vunpack.c.l.b16 %v82
    %v141 = vunpack.c.l.b16 %v83
    %v142 = vunpack.c.l.b16 %v84
    %v143 = vunpack.c.l.b16 %v85
    %v144 = vunpack.c.l.b16 %v86
    %v145 = vunpack.c.l.b16 %v87
    %v146 = vpack.c.b16 %v139, %v138
    %v147 = vpack.c.b16 %v141, %v140
    %v148 = vpack.c.b16 %v143, %v142
    %v149 = vpack.c.b16 %v145, %v144
    %v186 = vunpack.c.l.b16 %v88
    %v187 = vunpack.c.h.b16 %v88
    %v188 = vunpack.c.l.b16 %v89
    %v189 = vunpack.c.h.b16 %v89
    %v190 = vunpack.c.l.b16 %v90
    %v191 = vunpack.c.h.b16 %v90
    %v192 = vunpack.c.l.b16 %v91
    %v193 = vunpack.c.h.b16 %v91
    %v194 = vunpack.c.l.b16 %v92
    %v195 = vunpack.c.h.b16 %v92
    %v196 = vunpack.c.l.b16 %v93
    %v197 = vunpack.c.h.b16 %v93
    %v198 = vunpack.c.l.b16 %v94
    %v199 = vunpack.c.h.b16 %v94
    %v200 = vunpack.c.l.b16 %v95
    %v201 = vunpack.c.h.b16 %v95
    %v202 = vunpack.c.l.b16 %v96
    %v203 = vunpack.c.h.b16 %v96
    %v204 = vunpack.c.l.b16 %v97
    %v205 = vunpack.c.h.b16 %v97
    %v206 = vunpack.c.l.b16 %v98
    %v207 = vunpack.c.h.b16 %v98
    %v208 = vunpack.c.l.b16 %v99
    %v209 = vunpack.c.h.b16 %v99
    %v210 = vunpack.c.l.b16 %v100
    %v211 = vunpack.c.h.b16 %v100
    %v212 = vunpack.c.l.b16 %v101
    %v213 = vunpack.c.h.b16 %v101
    %v214 = vunpack.c.l.b16 %v102
    %v215 = vunpack.c.h.b16 %v102
    %v216 = vunpack.c.l.b16 %v103
    %v217 = vunpack.c.h.b16 %v103
    %v218 = vunpack.c.l.b16 %v104
    %v219 = vunpack.c.h.b16 %v104
    %v220 = vunpack.c.l.b16 %v105
    %v221 = vunpack.c.h.b16 %v105
    %v222 = vunpack.c.l.b16 %v106
    %v223 = vunpack.c.h.b16 %v106
    %v224 = vunpack.c.l.b16 %v107
    %v225 = vunpack.c.h.b16 %v107
    %v226 = vunpack.c.l.b16 %v108
    %v227 = vunpack.c.h.b16 %v108
    %v228 = vunpack.c.l.b16 %v109
    %v229 = vunpack.c.h.b16 %v109
    %v230 = vunpack.c.l.b16 %v110
    %v231 = vunpack.c.h.b16 %v110
    %v232 = vunpack.c.l.b16 %v111
    %v233 = vunpack.c.h.b16 %v111
    %v234 = vunpack.c.l.b16 %v112
    %v235 = vunpack.c.h.b16 %v112
    %v236 = vunpack.c.l.b16 %v113
    %v237 = vunpack.c.h.b16 %v113
    %v238 = vunpack.c.l.b16 %v114
    %v239 = vunpack.c.h.b16 %v114
    %v240 = vunpack.c.l.b16 %v115
    %v241 = vunpack.c.h.b16 %v115
    %v242 = vunpack.c.l.b16 %v116
    %v243 = vunpack.c.h.b16 %v116
    %v244 = vunpack.c.l.b16 %v117
    %v245 = vunpack.c.h.b16 %v117
    %v246 = vunpack.c.l.b16 %v118
    %v247 = vunpack.c.h.b16 %v118
    %v248 = vunpack.c.l.b16 %v119
    %v249 = vunpack.c.h.b16 %v119
    %v250 = vpack.c.b16 %v190, %v186
    %v251 = vpack.c.b16 %v191, %v187
    %v252 = vpack.c.b16 %v192, %v188
    %v253 = vpack.c.b16 %v193, %v189
    %v254 = vpack.c.b16 %v198, %v194
    %v255 = vpack.c.b16 %v199, %v195
    %v256 = vpack.c.b16 %v200, %v196
    %v257 = vpack.c.b16 %v201, %v197
    %v258 = vpack.c.b16 %v206, %v202
    %v259 = vpack.c.b16 %v207, %v203
    %v260 = vpack.c.b16 %v208, %v204
    %v261 = vpack.c.b16 %v209, %v205
    %v262 = vpack.c.b16 %v214, %v210
    %v263 = vpack.c.b16 %v215, %v211
    %v264 = vpack.c.b16 %v216, %v212
    %v265 = vpack.c.b16 %v217, %v213
    %v266 = vpack.c.b16 %v222, %v218
    %v267 = vpack.c.b16 %v223, %v219
    %v268 = vpack.c.b16 %v224, %v220
    %v269 = vpack.c.b16 %v225, %v221
    %v270 = vpack.c.b16 %v230, %v226
    %v271 = vpack.c.b16 %v231, %v227
    %v272 = vpack.c.b16 %v232, %v228
    %v273 = vpack.c.b16 %v233, %v229
    %v274 = vpack.c.b16 %v238, %v234
    %v275 = vpack.c.b16 %v239, %v235
    %v276 = vpack.c.b16 %v240, %v236
    %v277 = vpack.c.b16 %v241, %v237
    %v278 = vpack.c.b16 %v246, %v242
    %v279 = vpack.c.b16 %v247, %v243
    %v280 = vpack.c.b16 %v248, %v244
    %v281 = vpack.c.b16 %v249, %v245
    %314 = vmatpush.bf16.msra.mxu0 %v278
    %315 = vmatpush.bf16.msra.mxu0 %v274
    %316 = vmatpush.bf16.msra.mxu0 %v270
    %317 = vmatpush.bf16.msra.mxu0 %v266
    %318 = vmatpush.bf16.msra.mxu0 %v262
    %319 = vmatpush.bf16.msra.mxu0 %v258
    %320 = vmatpush.bf16.msra.mxu0 %v254
    %321 = vmatpush.bf16.msra.mxu0 %v250
    %322 = vmatmul.bf16.gmra.mxu0 %v146
    %v323 = vpop.f32.mrf.mxu0
    %v324 = vadd.f32 %v122, %v323
    %v325 = vpop.f32.mrf.mxu0
    %v326 = vadd.f32 %v122, %v325
    %327 = vmatmul.bf16.gmra.mxu0 %v147
    %v328 = vpop.f32.mrf.mxu0
    %v329 = vadd.f32 %v122, %v328
    %v330 = vpop.f32.mrf.mxu0
    %v331 = vadd.f32 %v122, %v330
    %332 = vmatmul.bf16.gmra.mxu0 %v148
    %v333 = vpop.f32.mrf.mxu0
    %v334 = vadd.f32 %v122, %v333
    %v335 = vpop.f32.mrf.mxu0
    %v336 = vadd.f32 %v122, %v335
    %337 = vmatmul.bf16.gmra.mxu0 %v149
    %v338 = vpop.f32.mrf.mxu0
    %v339 = vadd.f32 %v122, %v338
    %v340 = vpop.f32.mrf.mxu0
    %v341 = vadd.f32 %v122, %v340
    %342 = vdwg.mxu0
    %343 = vmatpush.bf16.msra.mxu0 %v279
    %344 = vmatpush.bf16.msra.mxu0 %v275
    %345 = vmatpush.bf16.msra.mxu0 %v271
    %346 = vmatpush.bf16.msra.mxu0 %v267
    %347 = vmatpush.bf16.msra.mxu0 %v263
    %348 = vmatpush.bf16.msra.mxu0 %v259
    %349 = vmatpush.bf16.msra.mxu0 %v255
    %350 = vmatpush.bf16.msra.mxu0 %v251
    %351 = vmatmul.bf16.gmra.mxu0 %v146
    %v352 = vpop.f32.mrf.mxu0
    %v353 = vadd.f32 %v123, %v352
    %v354 = vpop.f32.mrf.mxu0
    %v355 = vadd.f32 %v123, %v354
    %356 = vmatmul.bf16.gmra.mxu0 %v147
    %v357 = vpop.f32.mrf.mxu0
    %v358 = vadd.f32 %v123, %v357
    %v359 = vpop.f32.mrf.mxu0
    %v360 = vadd.f32 %v123, %v359
    %361 = vmatmul.bf16.gmra.mxu0 %v148
    %v362 = vpop.f32.mrf.mxu0
    %v363 = vadd.f32 %v123, %v362
    %v364 = vpop.f32.mrf.mxu0
    %v365 = vadd.f32 %v123, %v364
    %366 = vmatmul.bf16.gmra.mxu0 %v149
    %v367 = vpop.f32.mrf.mxu0
    %v368 = vadd.f32 %v123, %v367
    %v369 = vpop.f32.mrf.mxu0
    %v370 = vadd.f32 %v123, %v369
    %371 = vdwg.mxu0
    %372 = vmatpush.bf16.msra.mxu0 %v280
    %373 = vmatpush.bf16.msra.mxu0 %v276
    %374 = vmatpush.bf16.msra.mxu0 %v272
    %375 = vmatpush.bf16.msra.mxu0 %v268
    %376 = vmatpush.bf16.msra.mxu0 %v264
    %377 = vmatpush.bf16.msra.mxu0 %v260
    %378 = vmatpush.bf16.msra.mxu0 %v256
    %379 = vmatpush.bf16.msra.mxu0 %v252
    %380 = vmatmul.bf16.gmra.mxu0 %v146
    %v381 = vpop.f32.mrf.mxu0
    %v382 = vadd.f32 %v124, %v381
    %v383 = vpop.f32.mrf.mxu0
    %v384 = vadd.f32 %v124, %v383
    %385 = vmatmul.bf16.gmra.mxu0 %v147
    %v386 = vpop.f32.mrf.mxu0
    %v387 = vadd.f32 %v124, %v386
    %v388 = vpop.f32.mrf.mxu0
    %v389 = vadd.f32 %v124, %v388
    %390 = vmatmul.bf16.gmra.mxu0 %v148
    %v391 = vpop.f32.mrf.mxu0
    %v392 = vadd.f32 %v124, %v391
    %v393 = vpop.f32.mrf.mxu0
    %v394 = vadd.f32 %v124, %v393
    %395 = vmatmul.bf16.gmra.mxu0 %v149
    %v396 = vpop.f32.mrf.mxu0
    %v397 = vadd.f32 %v124, %v396
    %v398 = vpop.f32.mrf.mxu0
    %v399 = vadd.f32 %v124, %v398
    %400 = vdwg.mxu0
    %401 = vmatpush.bf16.msra.mxu0 %v281
    %402 = vmatpush.bf16.msra.mxu0 %v277
    %403 = vmatpush.bf16.msra.mxu0 %v273
    %404 = vmatpush.bf16.msra.mxu0 %v269
    %405 = vmatpush.bf16.msra.mxu0 %v265
    %406 = vmatpush.bf16.msra.mxu0 %v261
    %407 = vmatpush.bf16.msra.mxu0 %v257
    %408 = vmatpush.bf16.msra.mxu0 %v253
    %409 = vmatmul.bf16.gmra.mxu0 %v146
    %v410 = vpop.f32.mrf.mxu0
    %v411 = vadd.f32 %v125, %v410
    %v412 = vpop.f32.mrf.mxu0
    %v413 = vadd.f32 %v125, %v412
    %414 = vmatmul.bf16.gmra.mxu0 %v147
    %v415 = vpop.f32.mrf.mxu0
    %v416 = vadd.f32 %v125, %v415
    %v417 = vpop.f32.mrf.mxu0
    %v418 = vadd.f32 %v125, %v417
    %419 = vmatmul.bf16.gmra.mxu0 %v148
    %v420 = vpop.f32.mrf.mxu0
    %v421 = vadd.f32 %v125, %v420
    %v422 = vpop.f32.mrf.mxu0
    %v423 = vadd.f32 %v125, %v422
    %424 = vmatmul.bf16.gmra.mxu0 %v149
    %v425 = vpop.f32.mrf.mxu0
    %v426 = vadd.f32 %v125, %v425
    %v427 = vpop.f32.mrf.mxu0
    %v428 = vadd.f32 %v125, %v427
    %429 = vdwg.mxu0
    %430 = vst [vmem:[#allocation2] sm:$0xff] %v324
    %431 = vst [vmem:[#allocation2 + $0x8] sm:$0xff] %v353
    %432 = vst [vmem:[#allocation2 + $0x10] sm:$0xff] %v382
    %433 = vst [vmem:[#allocation2 + $0x18] sm:$0xff] %v411
    %434 = vst [vmem:[#allocation2 + $0x20] sm:$0xff] %v326
    %435 = vst [vmem:[#allocation2 + $0x28] sm:$0xff] %v355
    %436 = vst [vmem:[#allocation2 + $0x30] sm:$0xff] %v384
    %437 = vst [vmem:[#allocation2 + $0x38] sm:$0xff] %v413
    %438 = vst [vmem:[#allocation2 + $0x40] sm:$0xff] %v329
    %439 = vst [vmem:[#allocation2 + $0x48] sm:$0xff] %v358
    %440 = vst [vmem:[#allocation2 + $0x50] sm:$0xff] %v387
    %441 = vst [vmem:[#allocation2 + $0x58] sm:$0xff] %v416
    %442 = vst [vmem:[#allocation2 + $0x60] sm:$0xff] %v331
    %443 = vst [vmem:[#allocation2 + $0x68] sm:$0xff] %v360
    %444 = vst [vmem:[#allocation2 + $0x70] sm:$0xff] %v389
    %445 = vst [vmem:[#allocation2 + $0x78] sm:$0xff] %v418
    %446 = vst [vmem:[#allocation2 + $0x80] sm:$0xff] %v334
    %447 = vst [vmem:[#allocation2 + $0x88] sm:$0xff] %v363
    %448 = vst [vmem:[#allocation2 + $0x90] sm:$0xff] %v392
    %449 = vst [vmem:[#allocation2 + $0x98] sm:$0xff] %v421
    %450 = vst [vmem:[#allocation2 + $0xa0] sm:$0xff] %v336
    %451 = vst [vmem:[#allocation2 + $0xa8] sm:$0xff] %v365
    %452 = vst [vmem:[#allocation2 + $0xb0] sm:$0xff] %v394
    %453 = vst [vmem:[#allocation2 + $0xb8] sm:$0xff] %v423
    %454 = vst [vmem:[#allocation2 + $0xc0] sm:$0xff] %v339
    %455 = vst [vmem:[#allocation2 + $0xc8] sm:$0xff] %v368
    %456 = vst [vmem:[#allocation2 + $0xd0] sm:$0xff] %v397
    %457 = vst [vmem:[#allocation2 + $0xd8] sm:$0xff] %v426
    %458 = vst [vmem:[#allocation2 + $0xe0] sm:$0xff] %v341
    %459 = vst [vmem:[#allocation2 + $0xe8] sm:$0xff] %v370
    %460 = vst [vmem:[#allocation2 + $0xf0] sm:$0xff] %v399
    %461 = vst [vmem:[#allocation2 + $0xf8] sm:$0xff] %v428
    %v462 = vld [vmem:[#allocation9] sm:$0xff]
    %v463 = vld [vmem:[#allocation9 + $0x8] sm:$0xff]
    %v464 = vld [vmem:[#allocation9 + $0x10] sm:$0xff]
    %v465 = vld [vmem:[#allocation9 + $0x18] sm:$0xff]
    %v466 = vld [vmem:[#allocation9 + $0x20] sm:$0xff]
    %v467 = vld [vmem:[#allocation9 + $0x28] sm:$0xff]
    %v468 = vld [vmem:[#allocation9 + $0x30] sm:$0xff]
    %v469 = vld [vmem:[#allocation9 + $0x38] sm:$0xff]
    %v470 = vld [vmem:[#allocation9 + $0x40] sm:$0xff]
    %v471 = vld [vmem:[#allocation9 + $0x48] sm:$0xff]
    %v472 = vld [vmem:[#allocation9 + $0x50] sm:$0xff]
    %v473 = vld [vmem:[#allocation9 + $0x58] sm:$0xff]
    %v474 = vld [vmem:[#allocation9 + $0x60] sm:$0xff]
    %v475 = vld [vmem:[#allocation9 + $0x68] sm:$0xff]
    %v476 = vld [vmem:[#allocation9 + $0x70] sm:$0xff]
    %v477 = vld [vmem:[#allocation9 + $0x78] sm:$0xff]
    %v478 = vld [vmem:[#allocation9 + $0x80] sm:$0xff]
    %v479 = vld [vmem:[#allocation9 + $0x88] sm:$0xff]
    %v480 = vld [vmem:[#allocation9 + $0x90] sm:$0xff]
    %v481 = vld [vmem:[#allocation9 + $0x98] sm:$0xff]
    %v482 = vld [vmem:[#allocation9 + $0xa0] sm:$0xff]
    %v483 = vld [vmem:[#allocation9 + $0xa8] sm:$0xff]
    %v484 = vld [vmem:[#allocation9 + $0xb0] sm:$0xff]
    %v485 = vld [vmem:[#allocation9 + $0xb8] sm:$0xff]
    %v486 = vld [vmem:[#allocation9 + $0xc0] sm:$0xff]
    %v487 = vld [vmem:[#allocation9 + $0xc8] sm:$0xff]
    %v488 = vld [vmem:[#allocation9 + $0xd0] sm:$0xff]
    %v489 = vld [vmem:[#allocation9 + $0xd8] sm:$0xff]
    %v490 = vld [vmem:[#allocation9 + $0xe0] sm:$0xff]
    %v491 = vld [vmem:[#allocation9 + $0xe8] sm:$0xff]
    %v492 = vld [vmem:[#allocation9 + $0xf0] sm:$0xff]
    %v493 = vld [vmem:[#allocation9 + $0xf8] sm:$0xff]
    %v526 = vunpack.c.l.b16 %v462
    %v527 = vunpack.c.h.b16 %v462
    %v528 = vunpack.c.l.b16 %v463
    %v529 = vunpack.c.h.b16 %v463
    %v530 = vunpack.c.l.b16 %v464
    %v531 = vunpack.c.h.b16 %v464
    %v532 = vunpack.c.l.b16 %v465
    %v533 = vunpack.c.h.b16 %v465
    %v534 = vunpack.c.l.b16 %v466
    %v535 = vunpack.c.h.b16 %v466
    %v536 = vunpack.c.l.b16 %v467
    %v537 = vunpack.c.h.b16 %v467
    %v538 = vunpack.c.l.b16 %v468
    %v539 = vunpack.c.h.b16 %v468
    %v540 = vunpack.c.l.b16 %v469
    %v541 = vunpack.c.h.b16 %v469
    %v542 = vunpack.c.l.b16 %v470
    %v543 = vunpack.c.h.b16 %v470
    %v544 = vunpack.c.l.b16 %v471
    %v545 = vunpack.c.h.b16 %v471
    %v546 = vunpack.c.l.b16 %v472
    %v547 = vunpack.c.h.b16 %v472
    %v548 = vunpack.c.l.b16 %v473
    %v549 = vunpack.c.h.b16 %v473
    %v550 = vunpack.c.l.b16 %v474
    %v551 = vunpack.c.h.b16 %v474
    %v552 = vunpack.c.l.b16 %v475
    %v553 = vunpack.c.h.b16 %v475
    %v554 = vunpack.c.l.b16 %v476
    %v555 = vunpack.c.h.b16 %v476
    %v556 = vunpack.c.l.b16 %v477
    %v557 = vunpack.c.h.b16 %v477
    %v558 = vunpack.c.l.b16 %v478
    %v559 = vunpack.c.h.b16 %v478
    %v560 = vunpack.c.l.b16 %v479
    %v561 = vunpack.c.h.b16 %v479
    %v562 = vunpack.c.l.b16 %v480
    %v563 = vunpack.c.h.b16 %v480
    %v564 = vunpack.c.l.b16 %v481
    %v565 = vunpack.c.h.b16 %v481
    %v566 = vunpack.c.l.b16 %v482
    %v567 = vunpack.c.h.b16 %v482
    %v568 = vunpack.c.l.b16 %v483
    %v569 = vunpack.c.h.b16 %v483
    %v570 = vunpack.c.l.b16 %v484
    %v571 = vunpack.c.h.b16 %v484
    %v572 = vunpack.c.l.b16 %v485
    %v573 = vunpack.c.h.b16 %v485
    %v574 = vunpack.c.l.b16 %v486
    %v575 = vunpack.c.h.b16 %v486
    %v576 = vunpack.c.l.b16 %v487
    %v577 = vunpack.c.h.b16 %v487
    %v578 = vunpack.c.l.b16 %v488
    %v579 = vunpack.c.h.b16 %v488
    %v580 = vunpack.c.l.b16 %v489
    %v581 = vunpack.c.h.b16 %v489
    %v582 = vunpack.c.l.b16 %v490
    %v583 = vunpack.c.h.b16 %v490
    %v584 = vunpack.c.l.b16 %v491
    %v585 = vunpack.c.h.b16 %v491
    %v586 = vunpack.c.l.b16 %v492
    %v587 = vunpack.c.h.b16 %v492
    %v588 = vunpack.c.l.b16 %v493
    %v589 = vunpack.c.h.b16 %v493
    %v590 = vpack.c.b16 %v530, %v526
    %v591 = vpack.c.b16 %v531, %v527
    %v592 = vpack.c.b16 %v532, %v528
    %v593 = vpack.c.b16 %v533, %v529
    %v594 = vpack.c.b16 %v538, %v534
    %v595 = vpack.c.b16 %v539, %v535
    %v596 = vpack.c.b16 %v540, %v536
    %v597 = vpack.c.b16 %v541, %v537
    %v598 = vpack.c.b16 %v546, %v542
    %v599 = vpack.c.b16 %v547, %v543
    %v600 = vpack.c.b16 %v548, %v544
    %v601 = vpack.c.b16 %v549, %v545
    %v602 = vpack.c.b16 %v554, %v550
    %v603 = vpack.c.b16 %v555, %v551
    %v604 = vpack.c.b16 %v556, %v552
    %v605 = vpack.c.b16 %v557, %v553
    %v606 = vpack.c.b16 %v562, %v558
    %v607 = vpack.c.b16 %v563, %v559
    %v608 = vpack.c.b16 %v564, %v560
    %v609 = vpack.c.b16 %v565, %v561
    %v610 = vpack.c.b16 %v570, %v566
    %v611 = vpack.c.b16 %v571, %v567
    %v612 = vpack.c.b16 %v572, %v568
    %v613 = vpack.c.b16 %v573, %v569
    %v614 = vpack.c.b16 %v578, %v574
    %v615 = vpack.c.b16 %v579, %v575
    %v616 = vpack.c.b16 %v580, %v576
    %v617 = vpack.c.b16 %v581, %v577
    %v618 = vpack.c.b16 %v586, %v582
    %v619 = vpack.c.b16 %v587, %v583
    %v620 = vpack.c.b16 %v588, %v584
    %v621 = vpack.c.b16 %v589, %v585
    %654 = vmatpush.bf16.msra.mxu0 %v618
    %655 = vmatpush.bf16.msra.mxu0 %v614
    %656 = vmatpush.bf16.msra.mxu0 %v610
    %657 = vmatpush.bf16.msra.mxu0 %v606
    %658 = vmatpush.bf16.msra.mxu0 %v602
    %659 = vmatpush.bf16.msra.mxu0 %v598
    %660 = vmatpush.bf16.msra.mxu0 %v594
    %661 = vmatpush.bf16.msra.mxu0 %v590
    %662 = vmatmul.bf16.gmra.mxu0 0
    %v663 = vpop.f32.mrf.mxu0
    %v664 = vadd.f32 0.0, %v663
    %v665 = vpop.f32.mrf.mxu0
    %666 = vdwg.mxu0
    %667 = vmatpush.bf16.msra.mxu0 %v619
    %668 = vmatpush.bf16.msra.mxu0 %v615
    %669 = vmatpush.bf16.msra.mxu0 %v611
    %670 = vmatpush.bf16.msra.mxu0 %v607
    %671 = vmatpush.bf16.msra.mxu0 %v603
    %672 = vmatpush.bf16.msra.mxu0 %v599
    %673 = vmatpush.bf16.msra.mxu0 %v595
    %674 = vmatpush.bf16.msra.mxu0 %v591
    %675 = vmatmul.bf16.gmra.mxu0 0
    %v676 = vpop.f32.mrf.mxu0
    %v677 = vadd.f32 0.0, %v676
    %v678 = vpop.f32.mrf.mxu0
    %679 = vdwg.mxu0
    %680 = vmatpush.bf16.msra.mxu0 %v620
    %681 = vmatpush.bf16.msra.mxu0 %v616
    %682 = vmatpush.bf16.msra.mxu0 %v612
    %683 = vmatpush.bf16.msra.mxu0 %v608
    %684 = vmatpush.bf16.msra.mxu0 %v604
    %685 = vmatpush.bf16.msra.mxu0 %v600
    %686 = vmatpush.bf16.msra.mxu0 %v596
    %687 = vmatpush.bf16.msra.mxu0 %v592
    %688 = vmatmul.bf16.gmra.mxu0 0
    %v689 = vpop.f32.mrf.mxu0
    %v690 = vadd.f32 0.0, %v689
    %v691 = vpop.f32.mrf.mxu0
    %692 = vdwg.mxu0
    %693 = vmatpush.bf16.msra.mxu0 %v621
    %694 = vmatpush.bf16.msra.mxu0 %v617
    %695 = vmatpush.bf16.msra.mxu0 %v613
    %696 = vmatpush.bf16.msra.mxu0 %v609
    %697 = vmatpush.bf16.msra.mxu0 %v605
    %698 = vmatpush.bf16.msra.mxu0 %v601
    %699 = vmatpush.bf16.msra.mxu0 %v597
    %700 = vmatpush.bf16.msra.mxu0 %v593
    %701 = vmatmul.bf16.gmra.mxu0 0
    %v702 = vpop.f32.mrf.mxu0
    %v703 = vadd.f32 0.0, %v702
    %v704 = vpop.f32.mrf.mxu0
    %705 = vdwg.mxu0
    %s706 = smul.u32 0, 4
    %s707 = smul.addr %s706, 8
    %s708 = scalar_lea.vmem [#allocation2], %s707
    %v709 = vld [vmem:[%s708] sm:$0xff]
    %v710 = vld [vmem:[%s708 + $0x8] sm:$0xff]
    %v711 = vld [vmem:[%s708 + $0x10] sm:$0xff]
    %v712 = vld [vmem:[%s708 + $0x18] sm:$0xff]
    %v713 = vadd.f32 %v709, %v664
    %v714 = vadd.f32 %v710, %v677
    %v715 = vadd.f32 %v711, %v690
    %v716 = vadd.f32 %v712, %v703
    %v717 = vxor.u32 %v713, 2147483648
    %v718 = vmul.f32 %v717, 1.442695
    %v719 = vpow.pop %v718
    %v720 = vadd.f32 %v719, 1.0
    %v721 = vrcp.pop %v720
    %v722 = vmul.f32 %v720, %v721
    %v723 = vsub.f32 1.0, %v722
    %v724 = vmul.f32 %v721, %v723
    %v725 = vadd.f32 %v721, %v724
    %vm726 = vweird.f32 %v720
    %vm727 = vweird.f32 %v721
    %vm728 = vmor %vm726, %vm727
    %v729 = vsel %vm728, %v721, %v725
    %v730 = vand.u32 2147483647, %v720
    %vm731 = vcmp.eq.f32.partialorder %v730, 8.507059e+37
    %v732 = vand.u32 %v720, 2147483648
    %v733 = vor.u32 1.1754944e-38, %v732
    %v734 = vsel %vm731, %v733, %v729
    %v735 = vmul.f32 1.0, %v734
    %v736 = vxor.u32 %v714, 2147483648
    %v737 = vmul.f32 %v736, 1.442695
    %v738 = vpow.pop %v737
    %v739 = vadd.f32 %v738, 1.0
    %v740 = vrcp.pop %v739
    %v741 = vmul.f32 %v739, %v740
    %v742 = vsub.f32 1.0, %v741
    %v743 = vmul.f32 %v740, %v742
    %v744 = vadd.f32 %v740, %v743
    %vm745 = vweird.f32 %v739
    %vm746 = vweird.f32 %v740
    %vm747 = vmor %vm745, %vm746
    %v748 = vsel %vm747, %v740, %v744
    %v749 = vand.u32 2147483647, %v739
    %vm750 = vcmp.eq.f32.partialorder %v749, 8.507059e+37
    %v751 = vand.u32 %v739, 2147483648
    %v752 = vor.u32 1.1754944e-38, %v751
    %v753 = vsel %vm750, %v752, %v748
    %v754 = vmul.f32 1.0, %v753
    %v755 = vtanh.pop %v715
    %v756 = vxor.u32 %v716, 2147483648
    %v757 = vmul.f32 %v756, 1.442695
    %v758 = vpow.pop %v757
    %v759 = vadd.f32 %v758, 1.0
    %v760 = vrcp.pop %v759
    %v761 = vmul.f32 %v759, %v760
    %v762 = vsub.f32 1.0, %v761
    %v763 = vmul.f32 %v760, %v762
    %v764 = vadd.f32 %v760, %v763
    %vm765 = vweird.f32 %v759
    %vm766 = vweird.f32 %v760
    %vm767 = vmor %vm765, %vm766
    %v768 = vsel %vm767, %v760, %v764
    %v769 = vand.u32 2147483647, %v759
    %vm770 = vcmp.eq.f32.partialorder %v769, 8.507059e+37
    %v771 = vand.u32 %v759, 2147483648
    %v772 = vor.u32 1.1754944e-38, %v771
    %v773 = vsel %vm770, %v772, %v768
    %v774 = vmul.f32 1.0, %v773
    %v775 = vmul.f32 %v754, 0.0
    %v776 = vmul.f32 %v735, %v755
    %v777 = vadd.f32 %v775, %v776
    %v778 = vtanh.pop %v777
    %v779 = vmul.f32 %v774, %v778
    %780 = vst [vmem:[#allocation11] sm:$0xff] %v779
    %v781 = vpack.c.bf16 %v779, %v779
    %v782 = vld [vmem:[#allocation9] sm:$0xff]
    %v783 = vld [vmem:[#allocation9 + $0x8] sm:$0xff]
    %v784 = vld [vmem:[#allocation9 + $0x10] sm:$0xff]
    %v785 = vld [vmem:[#allocation9 + $0x18] sm:$0xff]
    %v786 = vld [vmem:[#allocation9 + $0x20] sm:$0xff]
    %v787 = vld [vmem:[#allocation9 + $0x28] sm:$0xff]
    %v788 = vld [vmem:[#allocation9 + $0x30] sm:$0xff]
    %v789 = vld [vmem:[#allocation9 + $0x38] sm:$0xff]
    %v790 = vld [vmem:[#allocation9 + $0x40] sm:$0xff]
    %v791 = vld [vmem:[#allocation9 + $0x48] sm:$0xff]
    %v792 = vld [vmem:[#allocation9 + $0x50] sm:$0xff]
    %v793 = vld [vmem:[#allocation9 + $0x58] sm:$0xff]
    %v794 = vld [vmem:[#allocation9 + $0x60] sm:$0xff]
    %v795 = vld [vmem:[#allocation9 + $0x68] sm:$0xff]
    %v796 = vld [vmem:[#allocation9 + $0x70] sm:$0xff]
    %v797 = vld [vmem:[#allocation9 + $0x78] sm:$0xff]
    %v798 = vld [vmem:[#allocation9 + $0x80] sm:$0xff]
    %v799 = vld [vmem:[#allocation9 + $0x88] sm:$0xff]
    %v800 = vld [vmem:[#allocation9 + $0x90] sm:$0xff]
    %v801 = vld [vmem:[#allocation9 + $0x98] sm:$0xff]
    %v802 = vld [vmem:[#allocation9 + $0xa0] sm:$0xff]
    %v803 = vld [vmem:[#allocation9 + $0xa8] sm:$0xff]
    %v804 = vld [vmem:[#allocation9 + $0xb0] sm:$0xff]
    %v805 = vld [vmem:[#allocation9 + $0xb8] sm:$0xff]
    %v806 = vld [vmem:[#allocation9 + $0xc0] sm:$0xff]
    %v807 = vld [vmem:[#allocation9 + $0xc8] sm:$0xff]
    %v808 = vld [vmem:[#allocation9 + $0xd0] sm:$0xff]
    %v809 = vld [vmem:[#allocation9 + $0xd8] sm:$0xff]
    %v810 = vld [vmem:[#allocation9 + $0xe0] sm:$0xff]
    %v811 = vld [vmem:[#allocation9 + $0xe8] sm:$0xff]
    %v812 = vld [vmem:[#allocation9 + $0xf0] sm:$0xff]
    %v813 = vld [vmem:[#allocation9 + $0xf8] sm:$0xff]
    %v846 = vunpack.c.l.b16 %v782
    %v847 = vunpack.c.h.b16 %v782
    %v848 = vunpack.c.l.b16 %v783
    %v849 = vunpack.c.h.b16 %v783
    %v850 = vunpack.c.l.b16 %v784
    %v851 = vunpack.c.h.b16 %v784
    %v852 = vunpack.c.l.b16 %v785
    %v853 = vunpack.c.h.b16 %v785
    %v854 = vunpack.c.l.b16 %v786
    %v855 = vunpack.c.h.b16 %v786
    %v856 = vunpack.c.l.b16 %v787
    %v857 = vunpack.c.h.b16 %v787
    %v858 = vunpack.c.l.b16 %v788
    %v859 = vunpack.c.h.b16 %v788
    %v860 = vunpack.c.l.b16 %v789
    %v861 = vunpack.c.h.b16 %v789
    %v862 = vunpack.c.l.b16 %v790
    %v863 = vunpack.c.h.b16 %v790
    %v864 = vunpack.c.l.b16 %v791
    %v865 = vunpack.c.h.b16 %v791
    %v866 = vunpack.c.l.b16 %v792
    %v867 = vunpack.c.h.b16 %v792
    %v868 = vunpack.c.l.b16 %v793
    %v869 = vunpack.c.h.b16 %v793
    %v870 = vunpack.c.l.b16 %v794
    %v871 = vunpack.c.h.b16 %v794
    %v872 = vunpack.c.l.b16 %v795
    %v873 = vunpack.c.h.b16 %v795
    %v874 = vunpack.c.l.b16 %v796
    %v875 = vunpack.c.h.b16 %v796
    %v876 = vunpack.c.l.b16 %v797
    %v877 = vunpack.c.h.b16 %v797
    %v878 = vunpack.c.l.b16 %v798
    %v879 = vunpack.c.h.b16 %v798
    %v880 = vunpack.c.l.b16 %v799
    %v881 = vunpack.c.h.b16 %v799
    %v882 = vunpack.c.l.b16 %v800
    %v883 = vunpack.c.h.b16 %v800
    %v884 = vunpack.c.l.b16 %v801
    %v885 = vunpack.c.h.b16 %v801
    %v886 = vunpack.c.l.b16 %v802
    %v887 = vunpack.c.h.b16 %v802
    %v888 = vunpack.c.l.b16 %v803
    %v889 = vunpack.c.h.b16 %v803
    %v890 = vunpack.c.l.b16 %v804
    %v891 = vunpack.c.h.b16 %v804
    %v892 = vunpack.c.l.b16 %v805
    %v893 = vunpack.c.h.b16 %v805
    %v894 = vunpack.c.l.b16 %v806
    %v895 = vunpack.c.h.b16 %v806
    %v896 = vunpack.c.l.b16 %v807
    %v897 = vunpack.c.h.b16 %v807
    %v898 = vunpack.c.l.b16 %v808
    %v899 = vunpack.c.h.b16 %v808
    %v900 = vunpack.c.l.b16 %v809
    %v901 = vunpack.c.h.b16 %v809
    %v902 = vunpack.c.l.b16 %v810
    %v903 = vunpack.c.h.b16 %v810
    %v904 = vunpack.c.l.b16 %v811
    %v905 = vunpack.c.h.b16 %v811
    %v906 = vunpack.c.l.b16 %v812
    %v907 = vunpack.c.h.b16 %v812
    %v908 = vunpack.c.l.b16 %v813
    %v909 = vunpack.c.h.b16 %v813
    %v910 = vpack.c.b16 %v850, %v846
    %v911 = vpack.c.b16 %v851, %v847
    %v912 = vpack.c.b16 %v852, %v848
    %v913 = vpack.c.b16 %v853, %v849
    %v914 = vpack.c.b16 %v858, %v854
    %v915 = vpack.c.b16 %v859, %v855
    %v916 = vpack.c.b16 %v860, %v856
    %v917 = vpack.c.b16 %v861, %v857
    %v918 = vpack.c.b16 %v866, %v862
    %v919 = vpack.c.b16 %v867, %v863
    %v920 = vpack.c.b16 %v868, %v864
    %v921 = vpack.c.b16 %v869, %v865
    %v922 = vpack.c.b16 %v874, %v870
    %v923 = vpack.c.b16 %v875, %v871
    %v924 = vpack.c.b16 %v876, %v872
    %v925 = vpack.c.b16 %v877, %v873
    %v926 = vpack.c.b16 %v882, %v878
    %v927 = vpack.c.b16 %v883, %v879
    %v928 = vpack.c.b16 %v884, %v880
    %v929 = vpack.c.b16 %v885, %v881
    %v930 = vpack.c.b16 %v890, %v886
    %v931 = vpack.c.b16 %v891, %v887
    %v932 = vpack.c.b16 %v892, %v888
    %v933 = vpack.c.b16 %v893, %v889
    %v934 = vpack.c.b16 %v898, %v894
    %v935 = vpack.c.b16 %v899, %v895
    %v936 = vpack.c.b16 %v900, %v896
    %v937 = vpack.c.b16 %v901, %v897
    %v938 = vpack.c.b16 %v906, %v902
    %v939 = vpack.c.b16 %v907, %v903
    %v940 = vpack.c.b16 %v908, %v904
    %v941 = vpack.c.b16 %v909, %v905
    %974 = vmatpush.bf16.msra.mxu0 %v938
    %975 = vmatpush.bf16.msra.mxu0 %v934
    %976 = vmatpush.bf16.msra.mxu0 %v930
    %977 = vmatpush.bf16.msra.mxu0 %v926
    %978 = vmatpush.bf16.msra.mxu0 %v922
    %979 = vmatpush.bf16.msra.mxu0 %v918
    %980 = vmatpush.bf16.msra.mxu0 %v914
    %981 = vmatpush.bf16.msra.mxu0 %v910
    %982 = vmatmul.bf16.gmra.mxu0 %v781
    %v983 = vpop.f32.mrf.mxu0
    %v984 = vadd.f32 0.0, %v983
    %v985 = vpop.f32.mrf.mxu0
    %986 = vdwg.mxu0
    %987 = vmatpush.bf16.msra.mxu0 %v939
    %988 = vmatpush.bf16.msra.mxu0 %v935
    %989 = vmatpush.bf16.msra.mxu0 %v931
    %990 = vmatpush.bf16.msra.mxu0 %v927
    %991 = vmatpush.bf16.msra.mxu0 %v923
    %992 = vmatpush.bf16.msra.mxu0 %v919
    %993 = vmatpush.bf16.msra.mxu0 %v915
    %994 = vmatpush.bf16.msra.mxu0 %v911
    %995 = vmatmul.bf16.gmra.mxu0 %v781
    %v996 = vpop.f32.mrf.mxu0
    %v997 = vadd.f32 0.0, %v996
    %v998 = vpop.f32.mrf.mxu0
    %999 = vdwg.mxu0
    %1000 = vmatpush.bf16.msra.mxu0 %v940
    %1001 = vmatpush.bf16.msra.mxu0 %v936
    %1002 = vmatpush.bf16.msra.mxu0 %v932
    %1003 = vmatpush.bf16.msra.mxu0 %v928
    %1004 = vmatpush.bf16.msra.mxu0 %v924
    %1005 = vmatpush.bf16.msra.mxu0 %v920
    %1006 = vmatpush.bf16.msra.mxu0 %v916
    %1007 = vmatpush.bf16.msra.mxu0 %v912
    %1008 = vmatmul.bf16.gmra.mxu0 %v781
    %v1009 = vpop.f32.mrf.mxu0
    %v1010 = vadd.f32 0.0, %v1009
    %v1011 = vpop.f32.mrf.mxu0
    %1012 = vdwg.mxu0
    %1013 = vmatpush.bf16.msra.mxu0 %v941
    %1014 = vmatpush.bf16.msra.mxu0 %v937
    %1015 = vmatpush.bf16.msra.mxu0 %v933
    %1016 = vmatpush.bf16.msra.mxu0 %v929
    %1017 = vmatpush.bf16.msra.mxu0 %v925
    %1018 = vmatpush.bf16.msra.mxu0 %v921
    %1019 = vmatpush.bf16.msra.mxu0 %v917
    %1020 = vmatpush.bf16.msra.mxu0 %v913
    %1021 = vmatmul.bf16.gmra.mxu0 %v781
    %v1022 = vpop.f32.mrf.mxu0
    %v1023 = vadd.f32 0.0, %v1022
    %v1024 = vpop.f32.mrf.mxu0
    %1025 = vdwg.mxu0
    %s1026 = smul.u32 1, 4
    %s1027 = smul.addr %s1026, 8
    %s1028 = scalar_lea.vmem [#allocation2], %s1027
    %v1029 = vld [vmem:[%s1028] sm:$0xff]
    %v1030 = vld [vmem:[%s1028 + $0x8] sm:$0xff]
    %v1031 = vld [vmem:[%s1028 + $0x10] sm:$0xff]
    %v1032 = vld [vmem:[%s1028 + $0x18] sm:$0xff]
    %v1033 = vadd.f32 %v1029, %v984
    %v1034 = vadd.f32 %v1030, %v997
    %v1035 = vadd.f32 %v1031, %v1010
    %v1036 = vadd.f32 %v1032, %v1023
    %v1037 = vxor.u32 %v1033, 2147483648
    %v1038 = vmul.f32 %v1037, 1.442695
    %v1039 = vpow.pop %v1038
    %v1040 = vadd.f32 %v1039, 1.0
    %v1041 = vrcp.pop %v1040
    %v1042 = vmul.f32 %v1040, %v1041
    %v1043 = vsub.f32 1.0, %v1042
    %v1044 = vmul.f32 %v1041, %v1043
    %v1045 = vadd.f32 %v1041, %v1044
    %vm1046 = vweird.f32 %v1040
    %vm1047 = vweird.f32 %v1041
    %vm1048 = vmor %vm1046, %vm1047
    %v1049 = vsel %vm1048, %v1041, %v1045
    %v1050 = vand.u32 2147483647, %v1040
    %vm1051 = vcmp.eq.f32.partialorder %v1050, 8.507059e+37
    %v1052 = vand.u32 %v1040, 2147483648
    %v1053 = vor.u32 1.1754944e-38, %v1052
    %v1054 = vsel %vm1051, %v1053, %v1049
    %v1055 = vmul.f32 1.0, %v1054
    %v1056 = vxor.u32 %v1034, 2147483648
    %v1057 = vmul.f32 %v1056, 1.442695
    %v1058 = vpow.pop %v1057
    %v1059 = vadd.f32 %v1058, 1.0
    %v1060 = vrcp.pop %v1059
    %v1061 = vmul.f32 %v1059, %v1060
    %v1062 = vsub.f32 1.0, %v1061
    %v1063 = vmul.f32 %v1060, %v1062
    %v1064 = vadd.f32 %v1060, %v1063
    %vm1065 = vweird.f32 %v1059
    %vm1066 = vweird.f32 %v1060
    %vm1067 = vmor %vm1065, %vm1066
    %v1068 = vsel %vm1067, %v1060, %v1064
    %v1069 = vand.u32 2147483647, %v1059
    %vm1070 = vcmp.eq.f32.partialorder %v1069, 8.507059e+37
    %v1071 = vand.u32 %v1059, 2147483648
    %v1072 = vor.u32 1.1754944e-38, %v1071
    %v1073 = vsel %vm1070, %v1072, %v1068
    %v1074 = vmul.f32 1.0, %v1073
    %v1075 = vtanh.pop %v1035
    %v1076 = vxor.u32 %v1036, 2147483648
    %v1077 = vmul.f32 %v1076, 1.442695
    %v1078 = vpow.pop %v1077
    %v1079 = vadd.f32 %v1078, 1.0
    %v1080 = vrcp.pop %v1079
    %v1081 = vmul.f32 %v1079, %v1080
    %v1082 = vsub.f32 1.0, %v1081
    %v1083 = vmul.f32 %v1080, %v1082
    %v1084 = vadd.f32 %v1080, %v1083
    %vm1085 = vweird.f32 %v1079
    %vm1086 = vweird.f32 %v1080
    %vm1087 = vmor %vm1085, %vm1086
    %v1088 = vsel %vm1087, %v1080, %v1084
    %v1089 = vand.u32 2147483647, %v1079
    %vm1090 = vcmp.eq.f32.partialorder %v1089, 8.507059e+37
    %v1091 = vand.u32 %v1079, 2147483648
    %v1092 = vor.u32 1.1754944e-38, %v1091
    %v1093 = vsel %vm1090, %v1092, %v1088
    %v1094 = vmul.f32 1.0, %v1093
    %v1095 = vmul.f32 %v1074, %v777
    %v1096 = vmul.f32 %v1055, %v1075
    %v1097 = vadd.f32 %v1095, %v1096
    %v1098 = vtanh.pop %v1097
    %v1099 = vmul.f32 %v1094, %v1098
    %s1100 = scalar_lea.vmem [#allocation11], 8
    %1101 = vst [vmem:[%s1100] sm:$0xff] %v1099
    %v1102 = vpack.c.bf16 %v1099, %v1099
    %v1103 = vld [vmem:[#allocation9] sm:$0xff]
    %v1104 = vld [vmem:[#allocation9 + $0x8] sm:$0xff]
    %v1105 = vld [vmem:[#allocation9 + $0x10] sm:$0xff]
    %v1106 = vld [vmem:[#allocation9 + $0x18] sm:$0xff]
    %v1107 = vld [vmem:[#allocation9 + $0x20] sm:$0xff]
    %v1108 = vld [vmem:[#allocation9 + $0x28] sm:$0xff]
    %v1109 = vld [vmem:[#allocation9 + $0x30] sm:$0xff]
    %v1110 = vld [vmem:[#allocation9 + $0x38] sm:$0xff]
    %v1111 = vld [vmem:[#allocation9 + $0x40] sm:$0xff]
    %v1112 = vld [vmem:[#allocation9 + $0x48] sm:$0xff]
    %v1113 = vld [vmem:[#allocation9 + $0x50] sm:$0xff]
    %v1114 = vld [vmem:[#allocation9 + $0x58] sm:$0xff]
    %v1115 = vld [vmem:[#allocation9 + $0x60] sm:$0xff]
    %v1116 = vld [vmem:[#allocation9 + $0x68] sm:$0xff]
    %v1117 = vld [vmem:[#allocation9 + $0x70] sm:$0xff]
    %v1118 = vld [vmem:[#allocation9 + $0x78] sm:$0xff]
    %v1119 = vld [vmem:[#allocation9 + $0x80] sm:$0xff]
    %v1120 = vld [vmem:[#allocation9 + $0x88] sm:$0xff]
    %v1121 = vld [vmem:[#allocation9 + $0x90] sm:$0xff]
    %v1122 = vld [vmem:[#allocation9 + $0x98] sm:$0xff]
    %v1123 = vld [vmem:[#allocation9 + $0xa0] sm:$0xff]
    %v1124 = vld [vmem:[#allocation9 + $0xa8] sm:$0xff]
    %v1125 = vld [vmem:[#allocation9 + $0xb0] sm:$0xff]
    %v1126 = vld [vmem:[#allocation9 + $0xb8] sm:$0xff]
    %v1127 = vld [vmem:[#allocation9 + $0xc0] sm:$0xff]
    %v1128 = vld [vmem:[#allocation9 + $0xc8] sm:$0xff]
    %v1129 = vld [vmem:[#allocation9 + $0xd0] sm:$0xff]
    %v1130 = vld [vmem:[#allocation9 + $0xd8] sm:$0xff]
    %v1131 = vld [vmem:[#allocation9 + $0xe0] sm:$0xff]
    %v1132 = vld [vmem:[#allocation9 + $0xe8] sm:$0xff]
    %v1133 = vld [vmem:[#allocation9 + $0xf0] sm:$0xff]
    %v1134 = vld [vmem:[#allocation9 + $0xf8] sm:$0xff]
    %v1167 = vunpack.c.l.b16 %v1103
    %v1168 = vunpack.c.h.b16 %v1103
    %v1169 = vunpack.c.l.b16 %v1104
    %v1170 = vunpack.c.h.b16 %v1104
    %v1171 = vunpack.c.l.b16 %v1105
    %v1172 = vunpack.c.h.b16 %v1105
    %v1173 = vunpack.c.l.b16 %v1106
    %v1174 = vunpack.c.h.b16 %v1106
    %v1175 = vunpack.c.l.b16 %v1107
    %v1176 = vunpack.c.h.b16 %v1107
    %v1177 = vunpack.c.l.b16 %v1108
    %v1178 = vunpack.c.h.b16 %v1108
    %v1179 = vunpack.c.l.b16 %v1109
    %v1180 = vunpack.c.h.b16 %v1109
    %v1181 = vunpack.c.l.b16 %v1110
    %v1182 = vunpack.c.h.b16 %v1110
    %v1183 = vunpack.c.l.b16 %v1111
    %v1184 = vunpack.c.h.b16 %v1111
    %v1185 = vunpack.c.l.b16 %v1112
    %v1186 = vunpack.c.h.b16 %v1112
    %v1187 = vunpack.c.l.b16 %v1113
    %v1188 = vunpack.c.h.b16 %v1113
    %v1189 = vunpack.c.l.b16 %v1114
    %v1190 = vunpack.c.h.b16 %v1114
    %v1191 = vunpack.c.l.b16 %v1115
    %v1192 = vunpack.c.h.b16 %v1115
    %v1193 = vunpack.c.l.b16 %v1116
    %v1194 = vunpack.c.h.b16 %v1116
    %v1195 = vunpack.c.l.b16 %v1117
    %v1196 = vunpack.c.h.b16 %v1117
    %v1197 = vunpack.c.l.b16 %v1118
    %v1198 = vunpack.c.h.b16 %v1118
    %v1199 = vunpack.c.l.b16 %v1119
    %v1200 = vunpack.c.h.b16 %v1119
    %v1201 = vunpack.c.l.b16 %v1120
    %v1202 = vunpack.c.h.b16 %v1120
    %v1203 = vunpack.c.l.b16 %v1121
    %v1204 = vunpack.c.h.b16 %v1121
    %v1205 = vunpack.c.l.b16 %v1122
    %v1206 = vunpack.c.h.b16 %v1122
    %v1207 = vunpack.c.l.b16 %v1123
    %v1208 = vunpack.c.h.b16 %v1123
    %v1209 = vunpack.c.l.b16 %v1124
    %v1210 = vunpack.c.h.b16 %v1124
    %v1211 = vunpack.c.l.b16 %v1125
    %v1212 = vunpack.c.h.b16 %v1125
    %v1213 = vunpack.c.l.b16 %v1126
    %v1214 = vunpack.c.h.b16 %v1126
    %v1215 = vunpack.c.l.b16 %v1127
    %v1216 = vunpack.c.h.b16 %v1127
    %v1217 = vunpack.c.l.b16 %v1128
    %v1218 = vunpack.c.h.b16 %v1128
    %v1219 = vunpack.c.l.b16 %v1129
    %v1220 = vunpack.c.h.b16 %v1129
    %v1221 = vunpack.c.l.b16 %v1130
    %v1222 = vunpack.c.h.b16 %v1130
    %v1223 = vunpack.c.l.b16 %v1131
    %v1224 = vunpack.c.h.b16 %v1131
    %v1225 = vunpack.c.l.b16 %v1132
    %v1226 = vunpack.c.h.b16 %v1132
    %v1227 = vunpack.c.l.b16 %v1133
    %v1228 = vunpack.c.h.b16 %v1133
    %v1229 = vunpack.c.l.b16 %v1134
    %v1230 = vunpack.c.h.b16 %v1134
    %v1231 = vpack.c.b16 %v1171, %v1167
    %v1232 = vpack.c.b16 %v1172, %v1168
    %v1233 = vpack.c.b16 %v1173, %v1169
    %v1234 = vpack.c.b16 %v1174, %v1170
    %v1235 = vpack.c.b16 %v1179, %v1175
    %v1236 = vpack.c.b16 %v1180, %v1176
    %v1237 = vpack.c.b16 %v1181, %v1177
    %v1238 = vpack.c.b16 %v1182, %v1178
    %v1239 = vpack.c.b16 %v1187, %v1183
    %v1240 = vpack.c.b16 %v1188, %v1184
    %v1241 = vpack.c.b16 %v1189, %v1185
    %v1242 = vpack.c.b16 %v1190, %v1186
    %v1243 = vpack.c.b16 %v1195, %v1191
    %v1244 = vpack.c.b16 %v1196, %v1192
    %v1245 = vpack.c.b16 %v1197, %v1193
    %v1246 = vpack.c.b16 %v1198, %v1194
    %v1247 = vpack.c.b16 %v1203, %v1199
    %v1248 = vpack.c.b16 %v1204, %v1200
    %v1249 = vpack.c.b16 %v1205, %v1201
    %v1250 = vpack.c.b16 %v1206, %v1202
    %v1251 = vpack.c.b16 %v1211, %v1207
    %v1252 = vpack.c.b16 %v1212, %v1208
    %v1253 = vpack.c.b16 %v1213, %v1209
    %v1254 = vpack.c.b16 %v1214, %v1210
    %v1255 = vpack.c.b16 %v1219, %v1215
    %v1256 = vpack.c.b16 %v1220, %v1216
    %v1257 = vpack.c.b16 %v1221, %v1217
    %v1258 = vpack.c.b16 %v1222, %v1218
    %v1259 = vpack.c.b16 %v1227, %v1223
    %v1260 = vpack.c.b16 %v1228, %v1224
    %v1261 = vpack.c.b16 %v1229, %v1225
    %v1262 = vpack.c.b16 %v1230, %v1226
    %1295 = vmatpush.bf16.msra.mxu0 %v1259
    %1296 = vmatpush.bf16.msra.mxu0 %v1255
    %1297 = vmatpush.bf16.msra.mxu0 %v1251
    %1298 = vmatpush.bf16.msra.mxu0 %v1247
    %1299 = vmatpush.bf16.msra.mxu0 %v1243
    %1300 = vmatpush.bf16.msra.mxu0 %v1239
    %1301 = vmatpush.bf16.msra.mxu0 %v1235
    %1302 = vmatpush.bf16.msra.mxu0 %v1231
    %1303 = vmatmul.bf16.gmra.mxu0 %v1102
    %v1304 = vpop.f32.mrf.mxu0
    %v1305 = vadd.f32 0.0, %v1304
    %v1306 = vpop.f32.mrf.mxu0
    %1307 = vdwg.mxu0
    %1308 = vmatpush.bf16.msra.mxu0 %v1260
    %1309 = vmatpush.bf16.msra.mxu0 %v1256
    %1310 = vmatpush.bf16.msra.mxu0 %v1252
    %1311 = vmatpush.bf16.msra.mxu0 %v1248
    %1312 = vmatpush.bf16.msra.mxu0 %v1244
    %1313 = vmatpush.bf16.msra.mxu0 %v1240
    %1314 = vmatpush.bf16.msra.mxu0 %v1236
    %1315 = vmatpush.bf16.msra.mxu0 %v1232
    %1316 = vmatmul.bf16.gmra.mxu0 %v1102
    %v1317 = vpop.f32.mrf.mxu0
    %v1318 = vadd.f32 0.0, %v1317
    %v1319 = vpop.f32.mrf.mxu0
    %1320 = vdwg.mxu0
    %1321 = vmatpush.bf16.msra.mxu0 %v1261
    %1322 = vmatpush.bf16.msra.mxu0 %v1257
    %1323 = vmatpush.bf16.msra.mxu0 %v1253
    %1324 = vmatpush.bf16.msra.mxu0 %v1249
    %1325 = vmatpush.bf16.msra.mxu0 %v1245
    %1326 = vmatpush.bf16.msra.mxu0 %v1241
    %1327 = vmatpush.bf16.msra.mxu0 %v1237
    %1328 = vmatpush.bf16.msra.mxu0 %v1233
    %1329 = vmatmul.bf16.gmra.mxu0 %v1102
    %v1330 = vpop.f32.mrf.mxu0
    %v1331 = vadd.f32 0.0, %v1330
    %v1332 = vpop.f32.mrf.mxu0
    %1333 = vdwg.mxu0
    %1334 = vmatpush.bf16.msra.mxu0 %v1262
    %1335 = vmatpush.bf16.msra.mxu0 %v1258
    %1336 = vmatpush.bf16.msra.mxu0 %v1254
    %1337 = vmatpush.bf16.msra.mxu0 %v1250
    %1338 = vmatpush.bf16.msra.mxu0 %v1246
    %1339 = vmatpush.bf16.msra.mxu0 %v1242
    %1340 = vmatpush.bf16.msra.mxu0 %v1238
    %1341 = vmatpush.bf16.msra.mxu0 %v1234
    %1342 = vmatmul.bf16.gmra.mxu0 %v1102
    %v1343 = vpop.f32.mrf.mxu0
    %v1344 = vadd.f32 0.0, %v1343
    %v1345 = vpop.f32.mrf.mxu0
    %1346 = vdwg.mxu0
    %s1347 = smul.u32 2, 4
    %s1348 = smul.addr %s1347, 8
    %s1349 = scalar_lea.vmem [#allocation2], %s1348
    %v1350 = vld [vmem:[%s1349] sm:$0xff]
    %v1351 = vld [vmem:[%s1349 + $0x8] sm:$0xff]
    %v1352 = vld [vmem:[%s1349 + $0x10] sm:$0xff]
    %v1353 = vld [vmem:[%s1349 + $0x18] sm:$0xff]
    %v1354 = vadd.f32 %v1350, %v1305
    %v1355 = vadd.f32 %v1351, %v1318
    %v1356 = vadd.f32 %v1352, %v1331
    %v1357 = vadd.f32 %v1353, %v1344
    %v1358 = vxor.u32 %v1354, 2147483648
    %v1359 = vmul.f32 %v1358, 1.442695
    %v1360 = vpow.pop %v1359
    %v1361 = vadd.f32 %v1360, 1.0
    %v1362 = vrcp.pop %v1361
    %v1363 = vmul.f32 %v1361, %v1362
    %v1364 = vsub.f32 1.0, %v1363
    %v1365 = vmul.f32 %v1362, %v1364
    %v1366 = vadd.f32 %v1362, %v1365
    %vm1367 = vweird.f32 %v1361
    %vm1368 = vweird.f32 %v1362
    %vm1369 = vmor %vm1367, %vm1368
    %v1370 = vsel %vm1369, %v1362, %v1366
    %v1371 = vand.u32 2147483647, %v1361
    %vm1372 = vcmp.eq.f32.partialorder %v1371, 8.507059e+37
    %v1373 = vand.u32 %v1361, 2147483648
    %v1374 = vor.u32 1.1754944e-38, %v1373
    %v1375 = vsel %vm1372, %v1374, %v1370
    %v1376 = vmul.f32 1.0, %v1375
    %v1377 = vxor.u32 %v1355, 2147483648
    %v1378 = vmul.f32 %v1377, 1.442695
    %v1379 = vpow.pop %v1378
    %v1380 = vadd.f32 %v1379, 1.0
    %v1381 = vrcp.pop %v1380
    %v1382 = vmul.f32 %v1380, %v1381
    %v1383 = vsub.f32 1.0, %v1382
    %v1384 = vmul.f32 %v1381, %v1383
    %v1385 = vadd.f32 %v1381, %v1384
    %vm1386 = vweird.f32 %v1380
    %vm1387 = vweird.f32 %v1381
    %vm1388 = vmor %vm1386, %vm1387
    %v1389 = vsel %vm1388, %v1381, %v1385
    %v1390 = vand.u32 2147483647, %v1380
    %vm1391 = vcmp.eq.f32.partialorder %v1390, 8.507059e+37
    %v1392 = vand.u32 %v1380, 2147483648
    %v1393 = vor.u32 1.1754944e-38, %v1392
    %v1394 = vsel %vm1391, %v1393, %v1389
    %v1395 = vmul.f32 1.0, %v1394
    %v1396 = vtanh.pop %v1356
    %v1397 = vxor.u32 %v1357, 2147483648
    %v1398 = vmul.f32 %v1397, 1.442695
    %v1399 = vpow.pop %v1398
    %v1400 = vadd.f32 %v1399, 1.0
    %v1401 = vrcp.pop %v1400
    %v1402 = vmul.f32 %v1400, %v1401
    %v1403 = vsub.f32 1.0, %v1402
    %v1404 = vmul.f32 %v1401, %v1403
    %v1405 = vadd.f32 %v1401, %v1404
    %vm1406 = vweird.f32 %v1400
    %vm1407 = vweird.f32 %v1401
    %vm1408 = vmor %vm1406, %vm1407
    %v1409 = vsel %vm1408, %v1401, %v1405
    %v1410 = vand.u32 2147483647, %v1400
    %vm1411 = vcmp.eq.f32.partialorder %v1410, 8.507059e+37
    %v1412 = vand.u32 %v1400, 2147483648
    %v1413 = vor.u32 1.1754944e-38, %v1412
    %v1414 = vsel %vm1411, %v1413, %v1409
    %v1415 = vmul.f32 1.0, %v1414
    %v1416 = vmul.f32 %v1395, %v1097
    %v1417 = vmul.f32 %v1376, %v1396
    %v1418 = vadd.f32 %v1416, %v1417
    %v1419 = vtanh.pop %v1418
    %v1420 = vmul.f32 %v1415, %v1419
    %s1421 = scalar_lea.vmem [#allocation11], 16
    %1422 = vst [vmem:[%s1421] sm:$0xff] %v1420
    %v1423 = vpack.c.bf16 %v1420, %v1420
    %v1424 = vld [vmem:[#allocation9] sm:$0xff]
    %v1425 = vld [vmem:[#allocation9 + $0x8] sm:$0xff]
    %v1426 = vld [vmem:[#allocation9 + $0x10] sm:$0xff]
    %v1427 = vld [vmem:[#allocation9 + $0x18] sm:$0xff]
    %v1428 = vld [vmem:[#allocation9 + $0x20] sm:$0xff]
    %v1429 = vld [vmem:[#allocation9 + $0x28] sm:$0xff]
    %v1430 = vld [vmem:[#allocation9 + $0x30] sm:$0xff]
    %v1431 = vld [vmem:[#allocation9 + $0x38] sm:$0xff]
    %v1432 = vld [vmem:[#allocation9 + $0x40] sm:$0xff]
    %v1433 = vld [vmem:[#allocation9 + $0x48] sm:$0xff]
    %v1434 = vld [vmem:[#allocation9 + $0x50] sm:$0xff]
    %v1435 = vld [vmem:[#allocation9 + $0x58] sm:$0xff]
    %v1436 = vld [vmem:[#allocation9 + $0x60] sm:$0xff]
    %v1437 = vld [vmem:[#allocation9 + $0x68] sm:$0xff]
    %v1438 = vld [vmem:[#allocation9 + $0x70] sm:$0xff]
    %v1439 = vld [vmem:[#allocation9 + $0x78] sm:$0xff]
    %v1440 = vld [vmem:[#allocation9 + $0x80] sm:$0xff]
    %v1441 = vld [vmem:[#allocation9 + $0x88] sm:$0xff]
    %v1442 = vld [vmem:[#allocation9 + $0x90] sm:$0xff]
    %v1443 = vld [vmem:[#allocation9 + $0x98] sm:$0xff]
    %v1444 = vld [vmem:[#allocation9 + $0xa0] sm:$0xff]
    %v1445 = vld [vmem:[#allocation9 + $0xa8] sm:$0xff]
    %v1446 = vld [vmem:[#allocation9 + $0xb0] sm:$0xff]
    %v1447 = vld [vmem:[#allocation9 + $0xb8] sm:$0xff]
    %v1448 = vld [vmem:[#allocation9 + $0xc0] sm:$0xff]
    %v1449 = vld [vmem:[#allocation9 + $0xc8] sm:$0xff]
    %v1450 = vld [vmem:[#allocation9 + $0xd0] sm:$0xff]
    %v1451 = vld [vmem:[#allocation9 + $0xd8] sm:$0xff]
    %v1452 = vld [vmem:[#allocation9 + $0xe0] sm:$0xff]
    %v1453 = vld [vmem:[#allocation9 + $0xe8] sm:$0xff]
    %v1454 = vld [vmem:[#allocation9 + $0xf0] sm:$0xff]
    %v1455 = vld [vmem:[#allocation9 + $0xf8] sm:$0xff]
    %v1488 = vunpack.c.l.b16 %v1424
    %v1489 = vunpack.c.h.b16 %v1424
    %v1490 = vunpack.c.l.b16 %v1425
    %v1491 = vunpack.c.h.b16 %v1425
    %v1492 = vunpack.c.l.b16 %v1426
    %v1493 = vunpack.c.h.b16 %v1426
    %v1494 = vunpack.c.l.b16 %v1427
    %v1495 = vunpack.c.h.b16 %v1427
    %v1496 = vunpack.c.l.b16 %v1428
    %v1497 = vunpack.c.h.b16 %v1428
    %v1498 = vunpack.c.l.b16 %v1429
    %v1499 = vunpack.c.h.b16 %v1429
    %v1500 = vunpack.c.l.b16 %v1430
    %v1501 = vunpack.c.h.b16 %v1430
    %v1502 = vunpack.c.l.b16 %v1431
    %v1503 = vunpack.c.h.b16 %v1431
    %v1504 = vunpack.c.l.b16 %v1432
    %v1505 = vunpack.c.h.b16 %v1432
    %v1506 = vunpack.c.l.b16 %v1433
    %v1507 = vunpack.c.h.b16 %v1433
    %v1508 = vunpack.c.l.b16 %v1434
    %v1509 = vunpack.c.h.b16 %v1434
    %v1510 = vunpack.c.l.b16 %v1435
    %v1511 = vunpack.c.h.b16 %v1435
    %v1512 = vunpack.c.l.b16 %v1436
    %v1513 = vunpack.c.h.b16 %v1436
    %v1514 = vunpack.c.l.b16 %v1437
    %v1515 = vunpack.c.h.b16 %v1437
    %v1516 = vunpack.c.l.b16 %v1438
    %v1517 = vunpack.c.h.b16 %v1438
    %v1518 = vunpack.c.l.b16 %v1439
    %v1519 = vunpack.c.h.b16 %v1439
    %v1520 = vunpack.c.l.b16 %v1440
    %v1521 = vunpack.c.h.b16 %v1440
    %v1522 = vunpack.c.l.b16 %v1441
    %v1523 = vunpack.c.h.b16 %v1441
    %v1524 = vunpack.c.l.b16 %v1442
    %v1525 = vunpack.c.h.b16 %v1442
    %v1526 = vunpack.c.l.b16 %v1443
    %v1527 = vunpack.c.h.b16 %v1443
    %v1528 = vunpack.c.l.b16 %v1444
    %v1529 = vunpack.c.h.b16 %v1444
    %v1530 = vunpack.c.l.b16 %v1445
    %v1531 = vunpack.c.h.b16 %v1445
    %v1532 = vunpack.c.l.b16 %v1446
    %v1533 = vunpack.c.h.b16 %v1446
    %v1534 = vunpack.c.l.b16 %v1447
    %v1535 = vunpack.c.h.b16 %v1447
    %v1536 = vunpack.c.l.b16 %v1448
    %v1537 = vunpack.c.h.b16 %v1448
    %v1538 = vunpack.c.l.b16 %v1449
    %v1539 = vunpack.c.h.b16 %v1449
    %v1540 = vunpack.c.l.b16 %v1450
    %v1541 = vunpack.c.h.b16 %v1450
    %v1542 = vunpack.c.l.b16 %v1451
    %v1543 = vunpack.c.h.b16 %v1451
    %v1544 = vunpack.c.l.b16 %v1452
    %v1545 = vunpack.c.h.b16 %v1452
    %v1546 = vunpack.c.l.b16 %v1453
    %v1547 = vunpack.c.h.b16 %v1453
    %v1548 = vunpack.c.l.b16 %v1454
    %v1549 = vunpack.c.h.b16 %v1454
    %v1550 = vunpack.c.l.b16 %v1455
    %v1551 = vunpack.c.h.b16 %v1455
    %v1552 = vpack.c.b16 %v1492, %v1488
    %v1553 = vpack.c.b16 %v1493, %v1489
    %v1554 = vpack.c.b16 %v1494, %v1490
    %v1555 = vpack.c.b16 %v1495, %v1491
    %v1556 = vpack.c.b16 %v1500, %v1496
    %v1557 = vpack.c.b16 %v1501, %v1497
    %v1558 = vpack.c.b16 %v1502, %v1498
    %v1559 = vpack.c.b16 %v1503, %v1499
    %v1560 = vpack.c.b16 %v1508, %v1504
    %v1561 = vpack.c.b16 %v1509, %v1505
    %v1562 = vpack.c.b16 %v1510, %v1506
    %v1563 = vpack.c.b16 %v1511, %v1507
    %v1564 = vpack.c.b16 %v1516, %v1512
    %v1565 = vpack.c.b16 %v1517, %v1513
    %v1566 = vpack.c.b16 %v1518, %v1514
    %v1567 = vpack.c.b16 %v1519, %v1515
    %v1568 = vpack.c.b16 %v1524, %v1520
    %v1569 = vpack.c.b16 %v1525, %v1521
    %v1570 = vpack.c.b16 %v1526, %v1522
    %v1571 = vpack.c.b16 %v1527, %v1523
    %v1572 = vpack.c.b16 %v1532, %v1528
    %v1573 = vpack.c.b16 %v1533, %v1529
    %v1574 = vpack.c.b16 %v1534, %v1530
    %v1575 = vpack.c.b16 %v1535, %v1531
    %v1576 = vpack.c.b16 %v1540, %v1536
    %v1577 = vpack.c.b16 %v1541, %v1537
    %v1578 = vpack.c.b16 %v1542, %v1538
    %v1579 = vpack.c.b16 %v1543, %v1539
    %v1580 = vpack.c.b16 %v1548, %v1544
    %v1581 = vpack.c.b16 %v1549, %v1545
    %v1582 = vpack.c.b16 %v1550, %v1546
    %v1583 = vpack.c.b16 %v1551, %v1547
    %1616 = vmatpush.bf16.msra.mxu0 %v1580
    %1617 = vmatpush.bf16.msra.mxu0 %v1576
    %1618 = vmatpush.bf16.msra.mxu0 %v1572
    %1619 = vmatpush.bf16.msra.mxu0 %v1568
    %1620 = vmatpush.bf16.msra.mxu0 %v1564
    %1621 = vmatpush.bf16.msra.mxu0 %v1560
    %1622 = vmatpush.bf16.msra.mxu0 %v1556
    %1623 = vmatpush.bf16.msra.mxu0 %v1552
    %1624 = vmatmul.bf16.gmra.mxu0 %v1423
    %v1625 = vpop.f32.mrf.mxu0
    %v1626 = vadd.f32 0.0, %v1625
    %v1627 = vpop.f32.mrf.mxu0
    %1628 = vdwg.mxu0
    %1629 = vmatpush.bf16.msra.mxu0 %v1581
    %1630 = vmatpush.bf16.msra.mxu0 %v1577
    %1631 = vmatpush.bf16.msra.mxu0 %v1573
    %1632 = vmatpush.bf16.msra.mxu0 %v1569
    %1633 = vmatpush.bf16.msra.mxu0 %v1565
    %1634 = vmatpush.bf16.msra.mxu0 %v1561
    %1635 = vmatpush.bf16.msra.mxu0 %v1557
    %1636 = vmatpush.bf16.msra.mxu0 %v1553
    %1637 = vmatmul.bf16.gmra.mxu0 %v1423
    %v1638 = vpop.f32.mrf.mxu0
    %v1639 = vadd.f32 0.0, %v1638
    %v1640 = vpop.f32.mrf.mxu0
    %1641 = vdwg.mxu0
    %1642 = vmatpush.bf16.msra.mxu0 %v1582
    %1643 = vmatpush.bf16.msra.mxu0 %v1578
    %1644 = vmatpush.bf16.msra.mxu0 %v1574
    %1645 = vmatpush.bf16.msra.mxu0 %v1570
    %1646 = vmatpush.bf16.msra.mxu0 %v1566
    %1647 = vmatpush.bf16.msra.mxu0 %v1562
    %1648 = vmatpush.bf16.msra.mxu0 %v1558
    %1649 = vmatpush.bf16.msra.mxu0 %v1554
    %1650 = vmatmul.bf16.gmra.mxu0 %v1423
    %v1651 = vpop.f32.mrf.mxu0
    %v1652 = vadd.f32 0.0, %v1651
    %v1653 = vpop.f32.mrf.mxu0
    %1654 = vdwg.mxu0
    %1655 = vmatpush.bf16.msra.mxu0 %v1583
    %1656 = vmatpush.bf16.msra.mxu0 %v1579
    %1657 = vmatpush.bf16.msra.mxu0 %v1575
    %1658 = vmatpush.bf16.msra.mxu0 %v1571
    %1659 = vmatpush.bf16.msra.mxu0 %v1567
    %1660 = vmatpush.bf16.msra.mxu0 %v1563
    %1661 = vmatpush.bf16.msra.mxu0 %v1559
    %1662 = vmatpush.bf16.msra.mxu0 %v1555
    %1663 = vmatmul.bf16.gmra.mxu0 %v1423
    %v1664 = vpop.f32.mrf.mxu0
    %v1665 = vadd.f32 0.0, %v1664
    %v1666 = vpop.f32.mrf.mxu0
    %1667 = vdwg.mxu0
    %s1668 = smul.u32 3, 4
    %s1669 = smul.addr %s1668, 8
    %s1670 = scalar_lea.vmem [#allocation2], %s1669
    %v1671 = vld [vmem:[%s1670] sm:$0xff]
    %v1672 = vld [vmem:[%s1670 + $0x8] sm:$0xff]
    %v1673 = vld [vmem:[%s1670 + $0x10] sm:$0xff]
    %v1674 = vld [vmem:[%s1670 + $0x18] sm:$0xff]
    %v1675 = vadd.f32 %v1671, %v1626
    %v1676 = vadd.f32 %v1672, %v1639
    %v1677 = vadd.f32 %v1673, %v1652
    %v1678 = vadd.f32 %v1674, %v1665
    %v1679 = vxor.u32 %v1675, 2147483648
    %v1680 = vmul.f32 %v1679, 1.442695
    %v1681 = vpow.pop %v1680
    %v1682 = vadd.f32 %v1681, 1.0
    %v1683 = vrcp.pop %v1682
    %v1684 = vmul.f32 %v1682, %v1683
    %v1685 = vsub.f32 1.0, %v1684
    %v1686 = vmul.f32 %v1683, %v1685
    %v1687 = vadd.f32 %v1683, %v1686
    %vm1688 = vweird.f32 %v1682
    %vm1689 = vweird.f32 %v1683
    %vm1690 = vmor %vm1688, %vm1689
    %v1691 = vsel %vm1690, %v1683, %v1687
    %v1692 = vand.u32 2147483647, %v1682
    %vm1693 = vcmp.eq.f32.partialorder %v1692, 8.507059e+37
    %v1694 = vand.u32 %v1682, 2147483648
    %v1695 = vor.u32 1.1754944e-38, %v1694
    %v1696 = vsel %vm1693, %v1695, %v1691
    %v1697 = vmul.f32 1.0, %v1696
    %v1698 = vxor.u32 %v1676, 2147483648
    %v1699 = vmul.f32 %v1698, 1.442695
    %v1700 = vpow.pop %v1699
    %v1701 = vadd.f32 %v1700, 1.0
    %v1702 = vrcp.pop %v1701
    %v1703 = vmul.f32 %v1701, %v1702
    %v1704 = vsub.f32 1.0, %v1703
    %v1705 = vmul.f32 %v1702, %v1704
    %v1706 = vadd.f32 %v1702, %v1705
    %vm1707 = vweird.f32 %v1701
    %vm1708 = vweird.f32 %v1702
    %vm1709 = vmor %vm1707, %vm1708
    %v1710 = vsel %vm1709, %v1702, %v1706
    %v1711 = vand.u32 2147483647, %v1701
    %vm1712 = vcmp.eq.f32.partialorder %v1711, 8.507059e+37
    %v1713 = vand.u32 %v1701, 2147483648
    %v1714 = vor.u32 1.1754944e-38, %v1713
    %v1715 = vsel %vm1712, %v1714, %v1710
    %v1716 = vmul.f32 1.0, %v1715
    %v1717 = vtanh.pop %v1677
    %v1718 = vxor.u32 %v1678, 2147483648
    %v1719 = vmul.f32 %v1718, 1.442695
    %v1720 = vpow.pop %v1719
    %v1721 = vadd.f32 %v1720, 1.0
    %v1722 = vrcp.pop %v1721
    %v1723 = vmul.f32 %v1721, %v1722
    %v1724 = vsub.f32 1.0, %v1723
    %v1725 = vmul.f32 %v1722, %v1724
    %v1726 = vadd.f32 %v1722, %v1725
    %vm1727 = vweird.f32 %v1721
    %vm1728 = vweird.f32 %v1722
    %vm1729 = vmor %vm1727, %vm1728
    %v1730 = vsel %vm1729, %v1722, %v1726
    %v1731 = vand.u32 2147483647, %v1721
    %vm1732 = vcmp.eq.f32.partialorder %v1731, 8.507059e+37
    %v1733 = vand.u32 %v1721, 2147483648
    %v1734 = vor.u32 1.1754944e-38, %v1733
    %v1735 = vsel %vm1732, %v1734, %v1730
    %v1736 = vmul.f32 1.0, %v1735
    %v1737 = vmul.f32 %v1716, %v1418
    %v1738 = vmul.f32 %v1697, %v1717
    %v1739 = vadd.f32 %v1737, %v1738
    %v1740 = vtanh.pop %v1739
    %v1741 = vmul.f32 %v1736, %v1740
    %s1742 = scalar_lea.vmem [#allocation11], 24
    %1743 = vst [vmem:[%s1742] sm:$0xff] %v1741
    %v1744 = vpack.c.bf16 %v1741, %v1741
    %v1745 = vld [vmem:[#allocation9] sm:$0xff]
    %v1746 = vld [vmem:[#allocation9 + $0x8] sm:$0xff]
    %v1747 = vld [vmem:[#allocation9 + $0x10] sm:$0xff]
    %v1748 = vld [vmem:[#allocation9 + $0x18] sm:$0xff]
    %v1749 = vld [vmem:[#allocation9 + $0x20] sm:$0xff]
    %v1750 = vld [vmem:[#allocation9 + $0x28] sm:$0xff]
    %v1751 = vld [vmem:[#allocation9 + $0x30] sm:$0xff]
    %v1752 = vld [vmem:[#allocation9 + $0x38] sm:$0xff]
    %v1753 = vld [vmem:[#allocation9 + $0x40] sm:$0xff]
    %v1754 = vld [vmem:[#allocation9 + $0x48] sm:$0xff]
    %v1755 = vld [vmem:[#allocation9 + $0x50] sm:$0xff]
    %v1756 = vld [vmem:[#allocation9 + $0x58] sm:$0xff]
    %v1757 = vld [vmem:[#allocation9 + $0x60] sm:$0xff]
    %v1758 = vld [vmem:[#allocation9 + $0x68] sm:$0xff]
    %v1759 = vld [vmem:[#allocation9 + $0x70] sm:$0xff]
    %v1760 = vld [vmem:[#allocation9 + $0x78] sm:$0xff]
    %v1761 = vld [vmem:[#allocation9 + $0x80] sm:$0xff]
    %v1762 = vld [vmem:[#allocation9 + $0x88] sm:$0xff]
    %v1763 = vld [vmem:[#allocation9 + $0x90] sm:$0xff]
    %v1764 = vld [vmem:[#allocation9 + $0x98] sm:$0xff]
    %v1765 = vld [vmem:[#allocation9 + $0xa0] sm:$0xff]
    %v1766 = vld [vmem:[#allocation9 + $0xa8] sm:$0xff]
    %v1767 = vld [vmem:[#allocation9 + $0xb0] sm:$0xff]
    %v1768 = vld [vmem:[#allocation9 + $0xb8] sm:$0xff]
    %v1769 = vld [vmem:[#allocation9 + $0xc0] sm:$0xff]
    %v1770 = vld [vmem:[#allocation9 + $0xc8] sm:$0xff]
    %v1771 = vld [vmem:[#allocation9 + $0xd0] sm:$0xff]
    %v1772 = vld [vmem:[#allocation9 + $0xd8] sm:$0xff]
    %v1773 = vld [vmem:[#allocation9 + $0xe0] sm:$0xff]
    %v1774 = vld [vmem:[#allocation9 + $0xe8] sm:$0xff]
    %v1775 = vld [vmem:[#allocation9 + $0xf0] sm:$0xff]
    %v1776 = vld [vmem:[#allocation9 + $0xf8] sm:$0xff]
    %v1809 = vunpack.c.l.b16 %v1745
    %v1810 = vunpack.c.h.b16 %v1745
    %v1811 = vunpack.c.l.b16 %v1746
    %v1812 = vunpack.c.h.b16 %v1746
    %v1813 = vunpack.c.l.b16 %v1747
    %v1814 = vunpack.c.h.b16 %v1747
    %v1815 = vunpack.c.l.b16 %v1748
    %v1816 = vunpack.c.h.b16 %v1748
    %v1817 = vunpack.c.l.b16 %v1749
    %v1818 = vunpack.c.h.b16 %v1749
    %v1819 = vunpack.c.l.b16 %v1750
    %v1820 = vunpack.c.h.b16 %v1750
    %v1821 = vunpack.c.l.b16 %v1751
    %v1822 = vunpack.c.h.b16 %v1751
    %v1823 = vunpack.c.l.b16 %v1752
    %v1824 = vunpack.c.h.b16 %v1752
    %v1825 = vunpack.c.l.b16 %v1753
    %v1826 = vunpack.c.h.b16 %v1753
    %v1827 = vunpack.c.l.b16 %v1754
    %v1828 = vunpack.c.h.b16 %v1754
    %v1829 = vunpack.c.l.b16 %v1755
    %v1830 = vunpack.c.h.b16 %v1755
    %v1831 = vunpack.c.l.b16 %v1756
    %v1832 = vunpack.c.h.b16 %v1756
    %v1833 = vunpack.c.l.b16 %v1757
    %v1834 = vunpack.c.h.b16 %v1757
    %v1835 = vunpack.c.l.b16 %v1758
    %v1836 = vunpack.c.h.b16 %v1758
    %v1837 = vunpack.c.l.b16 %v1759
    %v1838 = vunpack.c.h.b16 %v1759
    %v1839 = vunpack.c.l.b16 %v1760
    %v1840 = vunpack.c.h.b16 %v1760
    %v1841 = vunpack.c.l.b16 %v1761
    %v1842 = vunpack.c.h.b16 %v1761
    %v1843 = vunpack.c.l.b16 %v1762
    %v1844 = vunpack.c.h.b16 %v1762
    %v1845 = vunpack.c.l.b16 %v1763
    %v1846 = vunpack.c.h.b16 %v1763
    %v1847 = vunpack.c.l.b16 %v1764
    %v1848 = vunpack.c.h.b16 %v1764
    %v1849 = vunpack.c.l.b16 %v1765
    %v1850 = vunpack.c.h.b16 %v1765
    %v1851 = vunpack.c.l.b16 %v1766
    %v1852 = vunpack.c.h.b16 %v1766
    %v1853 = vunpack.c.l.b16 %v1767
    %v1854 = vunpack.c.h.b16 %v1767
    %v1855 = vunpack.c.l.b16 %v1768
    %v1856 = vunpack.c.h.b16 %v1768
    %v1857 = vunpack.c.l.b16 %v1769
    %v1858 = vunpack.c.h.b16 %v1769
    %v1859 = vunpack.c.l.b16 %v1770
    %v1860 = vunpack.c.h.b16 %v1770
    %v1861 = vunpack.c.l.b16 %v1771
    %v1862 = vunpack.c.h.b16 %v1771
    %v1863 = vunpack.c.l.b16 %v1772
    %v1864 = vunpack.c.h.b16 %v1772
    %v1865 = vunpack.c.l.b16 %v1773
    %v1866 = vunpack.c.h.b16 %v1773
    %v1867 = vunpack.c.l.b16 %v1774
    %v1868 = vunpack.c.h.b16 %v1774
    %v1869 = vunpack.c.l.b16 %v1775
    %v1870 = vunpack.c.h.b16 %v1775
    %v1871 = vunpack.c.l.b16 %v1776
    %v1872 = vunpack.c.h.b16 %v1776
    %v1873 = vpack.c.b16 %v1813, %v1809
    %v1874 = vpack.c.b16 %v1814, %v1810
    %v1875 = vpack.c.b16 %v1815, %v1811
    %v1876 = vpack.c.b16 %v1816, %v1812
    %v1877 = vpack.c.b16 %v1821, %v1817
    %v1878 = vpack.c.b16 %v1822, %v1818
    %v1879 = vpack.c.b16 %v1823, %v1819
    %v1880 = vpack.c.b16 %v1824, %v1820
    %v1881 = vpack.c.b16 %v1829, %v1825
    %v1882 = vpack.c.b16 %v1830, %v1826
    %v1883 = vpack.c.b16 %v1831, %v1827
    %v1884 = vpack.c.b16 %v1832, %v1828
    %v1885 = vpack.c.b16 %v1837, %v1833
    %v1886 = vpack.c.b16 %v1838, %v1834
    %v1887 = vpack.c.b16 %v1839, %v1835
    %v1888 = vpack.c.b16 %v1840, %v1836
    %v1889 = vpack.c.b16 %v1845, %v1841
    %v1890 = vpack.c.b16 %v1846, %v1842
    %v1891 = vpack.c.b16 %v1847, %v1843
    %v1892 = vpack.c.b16 %v1848, %v1844
    %v1893 = vpack.c.b16 %v1853, %v1849
    %v1894 = vpack.c.b16 %v1854, %v1850
    %v1895 = vpack.c.b16 %v1855, %v1851
    %v1896 = vpack.c.b16 %v1856, %v1852
    %v1897 = vpack.c.b16 %v1861, %v1857
    %v1898 = vpack.c.b16 %v1862, %v1858
    %v1899 = vpack.c.b16 %v1863, %v1859
    %v1900 = vpack.c.b16 %v1864, %v1860
    %v1901 = vpack.c.b16 %v1869, %v1865
    %v1902 = vpack.c.b16 %v1870, %v1866
    %v1903 = vpack.c.b16 %v1871, %v1867
    %v1904 = vpack.c.b16 %v1872, %v1868
    %1937 = vmatpush.bf16.msra.mxu0 %v1901
    %1938 = vmatpush.bf16.msra.mxu0 %v1897
    %1939 = vmatpush.bf16.msra.mxu0 %v1893
    %1940 = vmatpush.bf16.msra.mxu0 %v1889
    %1941 = vmatpush.bf16.msra.mxu0 %v1885
    %1942 = vmatpush.bf16.msra.mxu0 %v1881
    %1943 = vmatpush.bf16.msra.mxu0 %v1877
    %1944 = vmatpush.bf16.msra.mxu0 %v1873
    %1945 = vmatmul.bf16.gmra.mxu0 %v1744
    %v1946 = vpop.f32.mrf.mxu0
    %v1947 = vadd.f32 0.0, %v1946
    %v1948 = vpop.f32.mrf.mxu0
    %1949 = vdwg.mxu0
    %1950 = vmatpush.bf16.msra.mxu0 %v1902
    %1951 = vmatpush.bf16.msra.mxu0 %v1898
    %1952 = vmatpush.bf16.msra.mxu0 %v1894
    %1953 = vmatpush.bf16.msra.mxu0 %v1890
    %1954 = vmatpush.bf16.msra.mxu0 %v1886
    %1955 = vmatpush.bf16.msra.mxu0 %v1882
    %1956 = vmatpush.bf16.msra.mxu0 %v1878
    %1957 = vmatpush.bf16.msra.mxu0 %v1874
    %1958 = vmatmul.bf16.gmra.mxu0 %v1744
    %v1959 = vpop.f32.mrf.mxu0
    %v1960 = vadd.f32 0.0, %v1959
    %v1961 = vpop.f32.mrf.mxu0
    %1962 = vdwg.mxu0
    %1963 = vmatpush.bf16.msra.mxu0 %v1903
    %1964 = vmatpush.bf16.msra.mxu0 %v1899
    %1965 = vmatpush.bf16.msra.mxu0 %v1895
    %1966 = vmatpush.bf16.msra.mxu0 %v1891
    %1967 = vmatpush.bf16.msra.mxu0 %v1887
    %1968 = vmatpush.bf16.msra.mxu0 %v1883
    %1969 = vmatpush.bf16.msra.mxu0 %v1879
    %1970 = vmatpush.bf16.msra.mxu0 %v1875
    %1971 = vmatmul.bf16.gmra.mxu0 %v1744
    %v1972 = vpop.f32.mrf.mxu0
    %v1973 = vadd.f32 0.0, %v1972
    %v1974 = vpop.f32.mrf.mxu0
    %1975 = vdwg.mxu0
    %1976 = vmatpush.bf16.msra.mxu0 %v1904
    %1977 = vmatpush.bf16.msra.mxu0 %v1900
    %1978 = vmatpush.bf16.msra.mxu0 %v1896
    %1979 = vmatpush.bf16.msra.mxu0 %v1892
    %1980 = vmatpush.bf16.msra.mxu0 %v1888
    %1981 = vmatpush.bf16.msra.mxu0 %v1884
    %1982 = vmatpush.bf16.msra.mxu0 %v1880
    %1983 = vmatpush.bf16.msra.mxu0 %v1876
    %1984 = vmatmul.bf16.gmra.mxu0 %v1744
    %v1985 = vpop.f32.mrf.mxu0
    %v1986 = vadd.f32 0.0, %v1985
    %v1987 = vpop.f32.mrf.mxu0
    %1988 = vdwg.mxu0
    %s1989 = smul.u32 4, 4
    %s1990 = smul.addr %s1989, 8
    %s1991 = scalar_lea.vmem [#allocation2], %s1990
    %v1992 = vld [vmem:[%s1991] sm:$0xff]
    %v1993 = vld [vmem:[%s1991 + $0x8] sm:$0xff]
    %v1994 = vld [vmem:[%s1991 + $0x10] sm:$0xff]
    %v1995 = vld [vmem:[%s1991 + $0x18] sm:$0xff]
    %v1996 = vadd.f32 %v1992, %v1947
    %v1997 = vadd.f32 %v1993, %v1960
    %v1998 = vadd.f32 %v1994, %v1973
    %v1999 = vadd.f32 %v1995, %v1986
    %v2000 = vxor.u32 %v1996, 2147483648
    %v2001 = vmul.f32 %v2000, 1.442695
    %v2002 = vpow.pop %v2001
    %v2003 = vadd.f32 %v2002, 1.0
    %v2004 = vrcp.pop %v2003
    %v2005 = vmul.f32 %v2003, %v2004
    %v2006 = vsub.f32 1.0, %v2005
    %v2007 = vmul.f32 %v2004, %v2006
    %v2008 = vadd.f32 %v2004, %v2007
    %vm2009 = vweird.f32 %v2003
    %vm2010 = vweird.f32 %v2004
    %vm2011 = vmor %vm2009, %vm2010
    %v2012 = vsel %vm2011, %v2004, %v2008
    %v2013 = vand.u32 2147483647, %v2003
    %vm2014 = vcmp.eq.f32.partialorder %v2013, 8.507059e+37
    %v2015 = vand.u32 %v2003, 2147483648
    %v2016 = vor.u32 1.1754944e-38, %v2015
    %v2017 = vsel %vm2014, %v2016, %v2012
    %v2018 = vmul.f32 1.0, %v2017
    %v2019 = vxor.u32 %v1997, 2147483648
    %v2020 = vmul.f32 %v2019, 1.442695
    %v2021 = vpow.pop %v2020
    %v2022 = vadd.f32 %v2021, 1.0
    %v2023 = vrcp.pop %v2022
    %v2024 = vmul.f32 %v2022, %v2023
    %v2025 = vsub.f32 1.0, %v2024
    %v2026 = vmul.f32 %v2023, %v2025
    %v2027 = vadd.f32 %v2023, %v2026
    %vm2028 = vweird.f32 %v2022
    %vm2029 = vweird.f32 %v2023
    %vm2030 = vmor %vm2028, %vm2029
    %v2031 = vsel %vm2030, %v2023, %v2027
    %v2032 = vand.u32 2147483647, %v2022
    %vm2033 = vcmp.eq.f32.partialorder %v2032, 8.507059e+37
    %v2034 = vand.u32 %v2022, 2147483648
    %v2035 = vor.u32 1.1754944e-38, %v2034
    %v2036 = vsel %vm2033, %v2035, %v2031
    %v2037 = vmul.f32 1.0, %v2036
    %v2038 = vtanh.pop %v1998
    %v2039 = vxor.u32 %v1999, 2147483648
    %v2040 = vmul.f32 %v2039, 1.442695
    %v2041 = vpow.pop %v2040
    %v2042 = vadd.f32 %v2041, 1.0
    %v2043 = vrcp.pop %v2042
    %v2044 = vmul.f32 %v2042, %v2043
    %v2045 = vsub.f32 1.0, %v2044
    %v2046 = vmul.f32 %v2043, %v2045
    %v2047 = vadd.f32 %v2043, %v2046
    %vm2048 = vweird.f32 %v2042
    %vm2049 = vweird.f32 %v2043
    %vm2050 = vmor %vm2048, %vm2049
    %v2051 = vsel %vm2050, %v2043, %v2047
    %v2052 = vand.u32 2147483647, %v2042
    %vm2053 = vcmp.eq.f32.partialorder %v2052, 8.507059e+37
    %v2054 = vand.u32 %v2042, 2147483648
    %v2055 = vor.u32 1.1754944e-38, %v2054
    %v2056 = vsel %vm2053, %v2055, %v2051
    %v2057 = vmul.f32 1.0, %v2056
    %v2058 = vmul.f32 %v2037, %v1739
    %v2059 = vmul.f32 %v2018, %v2038
    %v2060 = vadd.f32 %v2058, %v2059
    %v2061 = vtanh.pop %v2060
    %v2062 = vmul.f32 %v2057, %v2061
    %s2063 = scalar_lea.vmem [#allocation11], 32
    %2064 = vst [vmem:[%s2063] sm:$0xff] %v2062
    %v2065 = vpack.c.bf16 %v2062, %v2062
    %v2066 = vld [vmem:[#allocation9] sm:$0xff]
    %v2067 = vld [vmem:[#allocation9 + $0x8] sm:$0xff]
    %v2068 = vld [vmem:[#allocation9 + $0x10] sm:$0xff]
    %v2069 = vld [vmem:[#allocation9 + $0x18] sm:$0xff]
    %v2070 = vld [vmem:[#allocation9 + $0x20] sm:$0xff]
    %v2071 = vld [vmem:[#allocation9 + $0x28] sm:$0xff]
    %v2072 = vld [vmem:[#allocation9 + $0x30] sm:$0xff]
    %v2073 = vld [vmem:[#allocation9 + $0x38] sm:$0xff]
    %v2074 = vld [vmem:[#allocation9 + $0x40] sm:$0xff]
    %v2075 = vld [vmem:[#allocation9 + $0x48] sm:$0xff]
    %v2076 = vld [vmem:[#allocation9 + $0x50] sm:$0xff]
    %v2077 = vld [vmem:[#allocation9 + $0x58] sm:$0xff]
    %v2078 = vld [vmem:[#allocation9 + $0x60] sm:$0xff]
    %v2079 = vld [vmem:[#allocation9 + $0x68] sm:$0xff]
    %v2080 = vld [vmem:[#allocation9 + $0x70] sm:$0xff]
    %v2081 = vld [vmem:[#allocation9 + $0x78] sm:$0xff]
    %v2082 = vld [vmem:[#allocation9 + $0x80] sm:$0xff]
    %v2083 = vld [vmem:[#allocation9 + $0x88] sm:$0xff]
    %v2084 = vld [vmem:[#allocation9 + $0x90] sm:$0xff]
    %v2085 = vld [vmem:[#allocation9 + $0x98] sm:$0xff]
    %v2086 = vld [vmem:[#allocation9 + $0xa0] sm:$0xff]
    %v2087 = vld [vmem:[#allocation9 + $0xa8] sm:$0xff]
    %v2088 = vld [vmem:[#allocation9 + $0xb0] sm:$0xff]
    %v2089 = vld [vmem:[#allocation9 + $0xb8] sm:$0xff]
    %v2090 = vld [vmem:[#allocation9 + $0xc0] sm:$0xff]
    %v2091 = vld [vmem:[#allocation9 + $0xc8] sm:$0xff]
    %v2092 = vld [vmem:[#allocation9 + $0xd0] sm:$0xff]
    %v2093 = vld [vmem:[#allocation9 + $0xd8] sm:$0xff]
    %v2094 = vld [vmem:[#allocation9 + $0xe0] sm:$0xff]
    %v2095 = vld [vmem:[#allocation9 + $0xe8] sm:$0xff]
    %v2096 = vld [vmem:[#allocation9 + $0xf0] sm:$0xff]
    %v2097 = vld [vmem:[#allocation9 + $0xf8] sm:$0xff]
    %v2130 = vunpack.c.l.b16 %v2066
    %v2131 = vunpack.c.h.b16 %v2066
    %v2132 = vunpack.c.l.b16 %v2067
    %v2133 = vunpack.c.h.b16 %v2067
    %v2134 = vunpack.c.l.b16 %v2068
    %v2135 = vunpack.c.h.b16 %v2068
    %v2136 = vunpack.c.l.b16 %v2069
    %v2137 = vunpack.c.h.b16 %v2069
    %v2138 = vunpack.c.l.b16 %v2070
    %v2139 = vunpack.c.h.b16 %v2070
    %v2140 = vunpack.c.l.b16 %v2071
    %v2141 = vunpack.c.h.b16 %v2071
    %v2142 = vunpack.c.l.b16 %v2072
    %v2143 = vunpack.c.h.b16 %v2072
    %v2144 = vunpack.c.l.b16 %v2073
    %v2145 = vunpack.c.h.b16 %v2073
    %v2146 = vunpack.c.l.b16 %v2074
    %v2147 = vunpack.c.h.b16 %v2074
    %v2148 = vunpack.c.l.b16 %v2075
    %v2149 = vunpack.c.h.b16 %v2075
    %v2150 = vunpack.c.l.b16 %v2076
    %v2151 = vunpack.c.h.b16 %v2076
    %v2152 = vunpack.c.l.b16 %v2077
    %v2153 = vunpack.c.h.b16 %v2077
    %v2154 = vunpack.c.l.b16 %v2078
    %v2155 = vunpack.c.h.b16 %v2078
    %v2156 = vunpack.c.l.b16 %v2079
    %v2157 = vunpack.c.h.b16 %v2079
    %v2158 = vunpack.c.l.b16 %v2080
    %v2159 = vunpack.c.h.b16 %v2080
    %v2160 = vunpack.c.l.b16 %v2081
    %v2161 = vunpack.c.h.b16 %v2081
    %v2162 = vunpack.c.l.b16 %v2082
    %v2163 = vunpack.c.h.b16 %v2082
    %v2164 = vunpack.c.l.b16 %v2083
    %v2165 = vunpack.c.h.b16 %v2083
    %v2166 = vunpack.c.l.b16 %v2084
    %v2167 = vunpack.c.h.b16 %v2084
    %v2168 = vunpack.c.l.b16 %v2085
    %v2169 = vunpack.c.h.b16 %v2085
    %v2170 = vunpack.c.l.b16 %v2086
    %v2171 = vunpack.c.h.b16 %v2086
    %v2172 = vunpack.c.l.b16 %v2087
    %v2173 = vunpack.c.h.b16 %v2087
    %v2174 = vunpack.c.l.b16 %v2088
    %v2175 = vunpack.c.h.b16 %v2088
    %v2176 = vunpack.c.l.b16 %v2089
    %v2177 = vunpack.c.h.b16 %v2089
    %v2178 = vunpack.c.l.b16 %v2090
    %v2179 = vunpack.c.h.b16 %v2090
    %v2180 = vunpack.c.l.b16 %v2091
    %v2181 = vunpack.c.h.b16 %v2091
    %v2182 = vunpack.c.l.b16 %v2092
    %v2183 = vunpack.c.h.b16 %v2092
    %v2184 = vunpack.c.l.b16 %v2093
    %v2185 = vunpack.c.h.b16 %v2093
    %v2186 = vunpack.c.l.b16 %v2094
    %v2187 = vunpack.c.h.b16 %v2094
    %v2188 = vunpack.c.l.b16 %v2095
    %v2189 = vunpack.c.h.b16 %v2095
    %v2190 = vunpack.c.l.b16 %v2096
    %v2191 = vunpack.c.h.b16 %v2096
    %v2192 = vunpack.c.l.b16 %v2097
    %v2193 = vunpack.c.h.b16 %v2097
    %v2194 = vpack.c.b16 %v2134, %v2130
    %v2195 = vpack.c.b16 %v2135, %v2131
    %v2196 = vpack.c.b16 %v2136, %v2132
    %v2197 = vpack.c.b16 %v2137, %v2133
    %v2198 = vpack.c.b16 %v2142, %v2138
    %v2199 = vpack.c.b16 %v2143, %v2139
    %v2200 = vpack.c.b16 %v2144, %v2140
    %v2201 = vpack.c.b16 %v2145, %v2141
    %v2202 = vpack.c.b16 %v2150, %v2146
    %v2203 = vpack.c.b16 %v2151, %v2147
    %v2204 = vpack.c.b16 %v2152, %v2148
    %v2205 = vpack.c.b16 %v2153, %v2149
    %v2206 = vpack.c.b16 %v2158, %v2154
    %v2207 = vpack.c.b16 %v2159, %v2155
    %v2208 = vpack.c.b16 %v2160, %v2156
    %v2209 = vpack.c.b16 %v2161, %v2157
    %v2210 = vpack.c.b16 %v2166, %v2162
    %v2211 = vpack.c.b16 %v2167, %v2163
    %v2212 = vpack.c.b16 %v2168, %v2164
    %v2213 = vpack.c.b16 %v2169, %v2165
    %v2214 = vpack.c.b16 %v2174, %v2170
    %v2215 = vpack.c.b16 %v2175, %v2171
    %v2216 = vpack.c.b16 %v2176, %v2172
    %v2217 = vpack.c.b16 %v2177, %v2173
    %v2218 = vpack.c.b16 %v2182, %v2178
    %v2219 = vpack.c.b16 %v2183, %v2179
    %v2220 = vpack.c.b16 %v2184, %v2180
    %v2221 = vpack.c.b16 %v2185, %v2181
    %v2222 = vpack.c.b16 %v2190, %v2186
    %v2223 = vpack.c.b16 %v2191, %v2187
    %v2224 = vpack.c.b16 %v2192, %v2188
    %v2225 = vpack.c.b16 %v2193, %v2189
    %2258 = vmatpush.bf16.msra.mxu0 %v2222
    %2259 = vmatpush.bf16.msra.mxu0 %v2218
    %2260 = vmatpush.bf16.msra.mxu0 %v2214
    %2261 = vmatpush.bf16.msra.mxu0 %v2210
    %2262 = vmatpush.bf16.msra.mxu0 %v2206
    %2263 = vmatpush.bf16.msra.mxu0 %v2202
    %2264 = vmatpush.bf16.msra.mxu0 %v2198
    %2265 = vmatpush.bf16.msra.mxu0 %v2194
    %2266 = vmatmul.bf16.gmra.mxu0 %v2065
    %v2267 = vpop.f32.mrf.mxu0
    %v2268 = vadd.f32 0.0, %v2267
    %v2269 = vpop.f32.mrf.mxu0
    %2270 = vdwg.mxu0
    %2271 = vmatpush.bf16.msra.mxu0 %v2223
    %2272 = vmatpush.bf16.msra.mxu0 %v2219
    %2273 = vmatpush.bf16.msra.mxu0 %v2215
    %2274 = vmatpush.bf16.msra.mxu0 %v2211
    %2275 = vmatpush.bf16.msra.mxu0 %v2207
    %2276 = vmatpush.bf16.msra.mxu0 %v2203
    %2277 = vmatpush.bf16.msra.mxu0 %v2199
    %2278 = vmatpush.bf16.msra.mxu0 %v2195
    %2279 = vmatmul.bf16.gmra.mxu0 %v2065
    %v2280 = vpop.f32.mrf.mxu0
    %v2281 = vadd.f32 0.0, %v2280
    %v2282 = vpop.f32.mrf.mxu0
    %2283 = vdwg.mxu0
    %2284 = vmatpush.bf16.msra.mxu0 %v2224
    %2285 = vmatpush.bf16.msra.mxu0 %v2220
    %2286 = vmatpush.bf16.msra.mxu0 %v2216
    %2287 = vmatpush.bf16.msra.mxu0 %v2212
    %2288 = vmatpush.bf16.msra.mxu0 %v2208
    %2289 = vmatpush.bf16.msra.mxu0 %v2204
    %2290 = vmatpush.bf16.msra.mxu0 %v2200
    %2291 = vmatpush.bf16.msra.mxu0 %v2196
    %2292 = vmatmul.bf16.gmra.mxu0 %v2065
    %v2293 = vpop.f32.mrf.mxu0
    %v2294 = vadd.f32 0.0, %v2293
    %v2295 = vpop.f32.mrf.mxu0
    %2296 = vdwg.mxu0
    %2297 = vmatpush.bf16.msra.mxu0 %v2225
    %2298 = vmatpush.bf16.msra.mxu0 %v2221
    %2299 = vmatpush.bf16.msra.mxu0 %v2217
    %2300 = vmatpush.bf16.msra.mxu0 %v2213
    %2301 = vmatpush.bf16.msra.mxu0 %v2209
    %2302 = vmatpush.bf16.msra.mxu0 %v2205
    %2303 = vmatpush.bf16.msra.mxu0 %v2201
    %2304 = vmatpush.bf16.msra.mxu0 %v2197
    %2305 = vmatmul.bf16.gmra.mxu0 %v2065
    %v2306 = vpop.f32.mrf.mxu0
    %v2307 = vadd.f32 0.0, %v2306
    %v2308 = vpop.f32.mrf.mxu0
    %2309 = vdwg.mxu0
    %s2310 = smul.u32 5, 4
    %s2311 = smul.addr %s2310, 8
    %s2312 = scalar_lea.vmem [#allocation2], %s2311
    %v2313 = vld [vmem:[%s2312] sm:$0xff]
    %v2314 = vld [vmem:[%s2312 + $0x8] sm:$0xff]
    %v2315 = vld [vmem:[%s2312 + $0x10] sm:$0xff]
    %v2316 = vld [vmem:[%s2312 + $0x18] sm:$0xff]
    %v2317 = vadd.f32 %v2313, %v2268
    %v2318 = vadd.f32 %v2314, %v2281
    %v2319 = vadd.f32 %v2315, %v2294
    %v2320 = vadd.f32 %v2316, %v2307
    %v2321 = vxor.u32 %v2317, 2147483648
    %v2322 = vmul.f32 %v2321, 1.442695
    %v2323 = vpow.pop %v2322
    %v2324 = vadd.f32 %v2323, 1.0
    %v2325 = vrcp.pop %v2324
    %v2326 = vmul.f32 %v2324, %v2325
    %v2327 = vsub.f32 1.0, %v2326
    %v2328 = vmul.f32 %v2325, %v2327
    %v2329 = vadd.f32 %v2325, %v2328
    %vm2330 = vweird.f32 %v2324
    %vm2331 = vweird.f32 %v2325
    %vm2332 = vmor %vm2330, %vm2331
    %v2333 = vsel %vm2332, %v2325, %v2329
    %v2334 = vand.u32 2147483647, %v2324
    %vm2335 = vcmp.eq.f32.partialorder %v2334, 8.507059e+37
    %v2336 = vand.u32 %v2324, 2147483648
    %v2337 = vor.u32 1.1754944e-38, %v2336
    %v2338 = vsel %vm2335, %v2337, %v2333
    %v2339 = vmul.f32 1.0, %v2338
    %v2340 = vxor.u32 %v2318, 2147483648
    %v2341 = vmul.f32 %v2340, 1.442695
    %v2342 = vpow.pop %v2341
    %v2343 = vadd.f32 %v2342, 1.0
    %v2344 = vrcp.pop %v2343
    %v2345 = vmul.f32 %v2343, %v2344
    %v2346 = vsub.f32 1.0, %v2345
    %v2347 = vmul.f32 %v2344, %v2346
    %v2348 = vadd.f32 %v2344, %v2347
    %vm2349 = vweird.f32 %v2343
    %vm2350 = vweird.f32 %v2344
    %vm2351 = vmor %vm2349, %vm2350
    %v2352 = vsel %vm2351, %v2344, %v2348
    %v2353 = vand.u32 2147483647, %v2343
    %vm2354 = vcmp.eq.f32.partialorder %v2353, 8.507059e+37
    %v2355 = vand.u32 %v2343, 2147483648
    %v2356 = vor.u32 1.1754944e-38, %v2355
    %v2357 = vsel %vm2354, %v2356, %v2352
    %v2358 = vmul.f32 1.0, %v2357
    %v2359 = vtanh.pop %v2319
    %v2360 = vxor.u32 %v2320, 2147483648
    %v2361 = vmul.f32 %v2360, 1.442695
    %v2362 = vpow.pop %v2361
    %v2363 = vadd.f32 %v2362, 1.0
    %v2364 = vrcp.pop %v2363
    %v2365 = vmul.f32 %v2363, %v2364
    %v2366 = vsub.f32 1.0, %v2365
    %v2367 = vmul.f32 %v2364, %v2366
    %v2368 = vadd.f32 %v2364, %v2367
    %vm2369 = vweird.f32 %v2363
    %vm2370 = vweird.f32 %v2364
    %vm2371 = vmor %vm2369, %vm2370
    %v2372 = vsel %vm2371, %v2364, %v2368
    %v2373 = vand.u32 2147483647, %v2363
    %vm2374 = vcmp.eq.f32.partialorder %v2373, 8.507059e+37
    %v2375 = vand.u32 %v2363, 2147483648
    %v2376 = vor.u32 1.1754944e-38, %v2375
    %v2377 = vsel %vm2374, %v2376, %v2372
    %v2378 = vmul.f32 1.0, %v2377
    %v2379 = vmul.f32 %v2358, %v2060
    %v2380 = vmul.f32 %v2339, %v2359
    %v2381 = vadd.f32 %v2379, %v2380
    %v2382 = vtanh.pop %v2381
    %v2383 = vmul.f32 %v2378, %v2382
    %s2384 = scalar_lea.vmem [#allocation11], 40
    %2385 = vst [vmem:[%s2384] sm:$0xff] %v2383
    %v2386 = vpack.c.bf16 %v2383, %v2383
    %v2387 = vld [vmem:[#allocation9] sm:$0xff]
    %v2388 = vld [vmem:[#allocation9 + $0x8] sm:$0xff]
    %v2389 = vld [vmem:[#allocation9 + $0x10] sm:$0xff]
    %v2390 = vld [vmem:[#allocation9 + $0x18] sm:$0xff]
    %v2391 = vld [vmem:[#allocation9 + $0x20] sm:$0xff]
    %v2392 = vld [vmem:[#allocation9 + $0x28] sm:$0xff]
    %v2393 = vld [vmem:[#allocation9 + $0x30] sm:$0xff]
    %v2394 = vld [vmem:[#allocation9 + $0x38] sm:$0xff]
    %v2395 = vld [vmem:[#allocation9 + $0x40] sm:$0xff]
    %v2396 = vld [vmem:[#allocation9 + $0x48] sm:$0xff]
    %v2397 = vld [vmem:[#allocation9 + $0x50] sm:$0xff]
    %v2398 = vld [vmem:[#allocation9 + $0x58] sm:$0xff]
    %v2399 = vld [vmem:[#allocation9 + $0x60] sm:$0xff]
    %v2400 = vld [vmem:[#allocation9 + $0x68] sm:$0xff]
    %v2401 = vld [vmem:[#allocation9 + $0x70] sm:$0xff]
    %v2402 = vld [vmem:[#allocation9 + $0x78] sm:$0xff]
    %v2403 = vld [vmem:[#allocation9 + $0x80] sm:$0xff]
    %v2404 = vld [vmem:[#allocation9 + $0x88] sm:$0xff]
    %v2405 = vld [vmem:[#allocation9 + $0x90] sm:$0xff]
    %v2406 = vld [vmem:[#allocation9 + $0x98] sm:$0xff]
    %v2407 = vld [vmem:[#allocation9 + $0xa0] sm:$0xff]
    %v2408 = vld [vmem:[#allocation9 + $0xa8] sm:$0xff]
    %v2409 = vld [vmem:[#allocation9 + $0xb0] sm:$0xff]
    %v2410 = vld [vmem:[#allocation9 + $0xb8] sm:$0xff]
    %v2411 = vld [vmem:[#allocation9 + $0xc0] sm:$0xff]
    %v2412 = vld [vmem:[#allocation9 + $0xc8] sm:$0xff]
    %v2413 = vld [vmem:[#allocation9 + $0xd0] sm:$0xff]
    %v2414 = vld [vmem:[#allocation9 + $0xd8] sm:$0xff]
    %v2415 = vld [vmem:[#allocation9 + $0xe0] sm:$0xff]
    %v2416 = vld [vmem:[#allocation9 + $0xe8] sm:$0xff]
    %v2417 = vld [vmem:[#allocation9 + $0xf0] sm:$0xff]
    %v2418 = vld [vmem:[#allocation9 + $0xf8] sm:$0xff]
    %v2451 = vunpack.c.l.b16 %v2387
    %v2452 = vunpack.c.h.b16 %v2387
    %v2453 = vunpack.c.l.b16 %v2388
    %v2454 = vunpack.c.h.b16 %v2388
    %v2455 = vunpack.c.l.b16 %v2389
    %v2456 = vunpack.c.h.b16 %v2389
    %v2457 = vunpack.c.l.b16 %v2390
    %v2458 = vunpack.c.h.b16 %v2390
    %v2459 = vunpack.c.l.b16 %v2391
    %v2460 = vunpack.c.h.b16 %v2391
    %v2461 = vunpack.c.l.b16 %v2392
    %v2462 = vunpack.c.h.b16 %v2392
    %v2463 = vunpack.c.l.b16 %v2393
    %v2464 = vunpack.c.h.b16 %v2393
    %v2465 = vunpack.c.l.b16 %v2394
    %v2466 = vunpack.c.h.b16 %v2394
    %v2467 = vunpack.c.l.b16 %v2395
    %v2468 = vunpack.c.h.b16 %v2395
    %v2469 = vunpack.c.l.b16 %v2396
    %v2470 = vunpack.c.h.b16 %v2396
    %v2471 = vunpack.c.l.b16 %v2397
    %v2472 = vunpack.c.h.b16 %v2397
    %v2473 = vunpack.c.l.b16 %v2398
    %v2474 = vunpack.c.h.b16 %v2398
    %v2475 = vunpack.c.l.b16 %v2399
    %v2476 = vunpack.c.h.b16 %v2399
    %v2477 = vunpack.c.l.b16 %v2400
    %v2478 = vunpack.c.h.b16 %v2400
    %v2479 = vunpack.c.l.b16 %v2401
    %v2480 = vunpack.c.h.b16 %v2401
    %v2481 = vunpack.c.l.b16 %v2402
    %v2482 = vunpack.c.h.b16 %v2402
    %v2483 = vunpack.c.l.b16 %v2403
    %v2484 = vunpack.c.h.b16 %v2403
    %v2485 = vunpack.c.l.b16 %v2404
    %v2486 = vunpack.c.h.b16 %v2404
    %v2487 = vunpack.c.l.b16 %v2405
    %v2488 = vunpack.c.h.b16 %v2405
    %v2489 = vunpack.c.l.b16 %v2406
    %v2490 = vunpack.c.h.b16 %v2406
    %v2491 = vunpack.c.l.b16 %v2407
    %v2492 = vunpack.c.h.b16 %v2407
    %v2493 = vunpack.c.l.b16 %v2408
    %v2494 = vunpack.c.h.b16 %v2408
    %v2495 = vunpack.c.l.b16 %v2409
    %v2496 = vunpack.c.h.b16 %v2409
    %v2497 = vunpack.c.l.b16 %v2410
    %v2498 = vunpack.c.h.b16 %v2410
    %v2499 = vunpack.c.l.b16 %v2411
    %v2500 = vunpack.c.h.b16 %v2411
    %v2501 = vunpack.c.l.b16 %v2412
    %v2502 = vunpack.c.h.b16 %v2412
    %v2503 = vunpack.c.l.b16 %v2413
    %v2504 = vunpack.c.h.b16 %v2413
    %v2505 = vunpack.c.l.b16 %v2414
    %v2506 = vunpack.c.h.b16 %v2414
    %v2507 = vunpack.c.l.b16 %v2415
    %v2508 = vunpack.c.h.b16 %v2415
    %v2509 = vunpack.c.l.b16 %v2416
    %v2510 = vunpack.c.h.b16 %v2416
    %v2511 = vunpack.c.l.b16 %v2417
    %v2512 = vunpack.c.h.b16 %v2417
    %v2513 = vunpack.c.l.b16 %v2418
    %v2514 = vunpack.c.h.b16 %v2418
    %v2515 = vpack.c.b16 %v2455, %v2451
    %v2516 = vpack.c.b16 %v2456, %v2452
    %v2517 = vpack.c.b16 %v2457, %v2453
    %v2518 = vpack.c.b16 %v2458, %v2454
    %v2519 = vpack.c.b16 %v2463, %v2459
    %v2520 = vpack.c.b16 %v2464, %v2460
    %v2521 = vpack.c.b16 %v2465, %v2461
    %v2522 = vpack.c.b16 %v2466, %v2462
    %v2523 = vpack.c.b16 %v2471, %v2467
    %v2524 = vpack.c.b16 %v2472, %v2468
    %v2525 = vpack.c.b16 %v2473, %v2469
    %v2526 = vpack.c.b16 %v2474, %v2470
    %v2527 = vpack.c.b16 %v2479, %v2475
    %v2528 = vpack.c.b16 %v2480, %v2476
    %v2529 = vpack.c.b16 %v2481, %v2477
    %v2530 = vpack.c.b16 %v2482, %v2478
    %v2531 = vpack.c.b16 %v2487, %v2483
    %v2532 = vpack.c.b16 %v2488, %v2484
    %v2533 = vpack.c.b16 %v2489, %v2485
    %v2534 = vpack.c.b16 %v2490, %v2486
    %v2535 = vpack.c.b16 %v2495, %v2491
    %v2536 = vpack.c.b16 %v2496, %v2492
    %v2537 = vpack.c.b16 %v2497, %v2493
    %v2538 = vpack.c.b16 %v2498, %v2494
    %v2539 = vpack.c.b16 %v2503, %v2499
    %v2540 = vpack.c.b16 %v2504, %v2500
    %v2541 = vpack.c.b16 %v2505, %v2501
    %v2542 = vpack.c.b16 %v2506, %v2502
    %v2543 = vpack.c.b16 %v2511, %v2507
    %v2544 = vpack.c.b16 %v2512, %v2508
    %v2545 = vpack.c.b16 %v2513, %v2509
    %v2546 = vpack.c.b16 %v2514, %v2510
    %2579 = vmatpush.bf16.msra.mxu0 %v2543
    %2580 = vmatpush.bf16.msra.mxu0 %v2539
    %2581 = vmatpush.bf16.msra.mxu0 %v2535
    %2582 = vmatpush.bf16.msra.mxu0 %v2531
    %2583 = vmatpush.bf16.msra.mxu0 %v2527
    %2584 = vmatpush.bf16.msra.mxu0 %v2523
    %2585 = vmatpush.bf16.msra.mxu0 %v2519
    %2586 = vmatpush.bf16.msra.mxu0 %v2515
    %2587 = vmatmul.bf16.gmra.mxu0 %v2386
    %v2588 = vpop.f32.mrf.mxu0
    %v2589 = vadd.f32 0.0, %v2588
    %v2590 = vpop.f32.mrf.mxu0
    %2591 = vdwg.mxu0
    %2592 = vmatpush.bf16.msra.mxu0 %v2544
    %2593 = vmatpush.bf16.msra.mxu0 %v2540
    %2594 = vmatpush.bf16.msra.mxu0 %v2536
    %2595 = vmatpush.bf16.msra.mxu0 %v2532
    %2596 = vmatpush.bf16.msra.mxu0 %v2528
    %2597 = vmatpush.bf16.msra.mxu0 %v2524
    %2598 = vmatpush.bf16.msra.mxu0 %v2520
    %2599 = vmatpush.bf16.msra.mxu0 %v2516
    %2600 = vmatmul.bf16.gmra.mxu0 %v2386
    %v2601 = vpop.f32.mrf.mxu0
    %v2602 = vadd.f32 0.0, %v2601
    %v2603 = vpop.f32.mrf.mxu0
    %2604 = vdwg.mxu0
    %2605 = vmatpush.bf16.msra.mxu0 %v2545
    %2606 = vmatpush.bf16.msra.mxu0 %v2541
    %2607 = vmatpush.bf16.msra.mxu0 %v2537
    %2608 = vmatpush.bf16.msra.mxu0 %v2533
    %2609 = vmatpush.bf16.msra.mxu0 %v2529
    %2610 = vmatpush.bf16.msra.mxu0 %v2525
    %2611 = vmatpush.bf16.msra.mxu0 %v2521
    %2612 = vmatpush.bf16.msra.mxu0 %v2517
    %2613 = vmatmul.bf16.gmra.mxu0 %v2386
    %v2614 = vpop.f32.mrf.mxu0
    %v2615 = vadd.f32 0.0, %v2614
    %v2616 = vpop.f32.mrf.mxu0
    %2617 = vdwg.mxu0
    %2618 = vmatpush.bf16.msra.mxu0 %v2546
    %2619 = vmatpush.bf16.msra.mxu0 %v2542
    %2620 = vmatpush.bf16.msra.mxu0 %v2538
    %2621 = vmatpush.bf16.msra.mxu0 %v2534
    %2622 = vmatpush.bf16.msra.mxu0 %v2530
    %2623 = vmatpush.bf16.msra.mxu0 %v2526
    %2624 = vmatpush.bf16.msra.mxu0 %v2522
    %2625 = vmatpush.bf16.msra.mxu0 %v2518
    %2626 = vmatmul.bf16.gmra.mxu0 %v2386
    %v2627 = vpop.f32.mrf.mxu0
    %v2628 = vadd.f32 0.0, %v2627
    %v2629 = vpop.f32.mrf.mxu0
    %2630 = vdwg.mxu0
    %s2631 = smul.u32 6, 4
    %s2632 = smul.addr %s2631, 8
    %s2633 = scalar_lea.vmem [#allocation2], %s2632
    %v2634 = vld [vmem:[%s2633] sm:$0xff]
    %v2635 = vld [vmem:[%s2633 + $0x8] sm:$0xff]
    %v2636 = vld [vmem:[%s2633 + $0x10] sm:$0xff]
    %v2637 = vld [vmem:[%s2633 + $0x18] sm:$0xff]
    %v2638 = vadd.f32 %v2634, %v2589
    %v2639 = vadd.f32 %v2635, %v2602
    %v2640 = vadd.f32 %v2636, %v2615
    %v2641 = vadd.f32 %v2637, %v2628
    %v2642 = vxor.u32 %v2638, 2147483648
    %v2643 = vmul.f32 %v2642, 1.442695
    %v2644 = vpow.pop %v2643
    %v2645 = vadd.f32 %v2644, 1.0
    %v2646 = vrcp.pop %v2645
    %v2647 = vmul.f32 %v2645, %v2646
    %v2648 = vsub.f32 1.0, %v2647
    %v2649 = vmul.f32 %v2646, %v2648
    %v2650 = vadd.f32 %v2646, %v2649
    %vm2651 = vweird.f32 %v2645
    %vm2652 = vweird.f32 %v2646
    %vm2653 = vmor %vm2651, %vm2652
    %v2654 = vsel %vm2653, %v2646, %v2650
    %v2655 = vand.u32 2147483647, %v2645
    %vm2656 = vcmp.eq.f32.partialorder %v2655, 8.507059e+37
    %v2657 = vand.u32 %v2645, 2147483648
    %v2658 = vor.u32 1.1754944e-38, %v2657
    %v2659 = vsel %vm2656, %v2658, %v2654
    %v2660 = vmul.f32 1.0, %v2659
    %v2661 = vxor.u32 %v2639, 2147483648
    %v2662 = vmul.f32 %v2661, 1.442695
    %v2663 = vpow.pop %v2662
    %v2664 = vadd.f32 %v2663, 1.0
    %v2665 = vrcp.pop %v2664
    %v2666 = vmul.f32 %v2664, %v2665
    %v2667 = vsub.f32 1.0, %v2666
    %v2668 = vmul.f32 %v2665, %v2667
    %v2669 = vadd.f32 %v2665, %v2668
    %vm2670 = vweird.f32 %v2664
    %vm2671 = vweird.f32 %v2665
    %vm2672 = vmor %vm2670, %vm2671
    %v2673 = vsel %vm2672, %v2665, %v2669
    %v2674 = vand.u32 2147483647, %v2664
    %vm2675 = vcmp.eq.f32.partialorder %v2674, 8.507059e+37
    %v2676 = vand.u32 %v2664, 2147483648
    %v2677 = vor.u32 1.1754944e-38, %v2676
    %v2678 = vsel %vm2675, %v2677, %v2673
    %v2679 = vmul.f32 1.0, %v2678
    %v2680 = vtanh.pop %v2640
    %v2681 = vxor.u32 %v2641, 2147483648
    %v2682 = vmul.f32 %v2681, 1.442695
    %v2683 = vpow.pop %v2682
    %v2684 = vadd.f32 %v2683, 1.0
    %v2685 = vrcp.pop %v2684
    %v2686 = vmul.f32 %v2684, %v2685
    %v2687 = vsub.f32 1.0, %v2686
    %v2688 = vmul.f32 %v2685, %v2687
    %v2689 = vadd.f32 %v2685, %v2688
    %vm2690 = vweird.f32 %v2684
    %vm2691 = vweird.f32 %v2685
    %vm2692 = vmor %vm2690, %vm2691
    %v2693 = vsel %vm2692, %v2685, %v2689
    %v2694 = vand.u32 2147483647, %v2684
    %vm2695 = vcmp.eq.f32.partialorder %v2694, 8.507059e+37
    %v2696 = vand.u32 %v2684, 2147483648
    %v2697 = vor.u32 1.1754944e-38, %v2696
    %v2698 = vsel %vm2695, %v2697, %v2693
    %v2699 = vmul.f32 1.0, %v2698
    %v2700 = vmul.f32 %v2679, %v2381
    %v2701 = vmul.f32 %v2660, %v2680
    %v2702 = vadd.f32 %v2700, %v2701
    %v2703 = vtanh.pop %v2702
    %v2704 = vmul.f32 %v2699, %v2703
    %s2705 = scalar_lea.vmem [#allocation11], 48
    %2706 = vst [vmem:[%s2705] sm:$0xff] %v2704
    %v2707 = vpack.c.bf16 %v2704, %v2704
    %v2708 = vld [vmem:[#allocation9] sm:$0xff]
    %v2709 = vld [vmem:[#allocation9 + $0x8] sm:$0xff]
    %v2710 = vld [vmem:[#allocation9 + $0x10] sm:$0xff]
    %v2711 = vld [vmem:[#allocation9 + $0x18] sm:$0xff]
    %v2712 = vld [vmem:[#allocation9 + $0x20] sm:$0xff]
    %v2713 = vld [vmem:[#allocation9 + $0x28] sm:$0xff]
    %v2714 = vld [vmem:[#allocation9 + $0x30] sm:$0xff]
    %v2715 = vld [vmem:[#allocation9 + $0x38] sm:$0xff]
    %v2716 = vld [vmem:[#allocation9 + $0x40] sm:$0xff]
    %v2717 = vld [vmem:[#allocation9 + $0x48] sm:$0xff]
    %v2718 = vld [vmem:[#allocation9 + $0x50] sm:$0xff]
    %v2719 = vld [vmem:[#allocation9 + $0x58] sm:$0xff]
    %v2720 = vld [vmem:[#allocation9 + $0x60] sm:$0xff]
    %v2721 = vld [vmem:[#allocation9 + $0x68] sm:$0xff]
    %v2722 = vld [vmem:[#allocation9 + $0x70] sm:$0xff]
    %v2723 = vld [vmem:[#allocation9 + $0x78] sm:$0xff]
    %v2724 = vld [vmem:[#allocation9 + $0x80] sm:$0xff]
    %v2725 = vld [vmem:[#allocation9 + $0x88] sm:$0xff]
    %v2726 = vld [vmem:[#allocation9 + $0x90] sm:$0xff]
    %v2727 = vld [vmem:[#allocation9 + $0x98] sm:$0xff]
    %v2728 = vld [vmem:[#allocation9 + $0xa0] sm:$0xff]
    %v2729 = vld [vmem:[#allocation9 + $0xa8] sm:$0xff]
    %v2730 = vld [vmem:[#allocation9 + $0xb0] sm:$0xff]
    %v2731 = vld [vmem:[#allocation9 + $0xb8] sm:$0xff]
    %v2732 = vld [vmem:[#allocation9 + $0xc0] sm:$0xff]
    %v2733 = vld [vmem:[#allocation9 + $0xc8] sm:$0xff]
    %v2734 = vld [vmem:[#allocation9 + $0xd0] sm:$0xff]
    %v2735 = vld [vmem:[#allocation9 + $0xd8] sm:$0xff]
    %v2736 = vld [vmem:[#allocation9 + $0xe0] sm:$0xff]
    %v2737 = vld [vmem:[#allocation9 + $0xe8] sm:$0xff]
    %v2738 = vld [vmem:[#allocation9 + $0xf0] sm:$0xff]
    %v2739 = vld [vmem:[#allocation9 + $0xf8] sm:$0xff]
    %v2772 = vunpack.c.l.b16 %v2708
    %v2773 = vunpack.c.h.b16 %v2708
    %v2774 = vunpack.c.l.b16 %v2709
    %v2775 = vunpack.c.h.b16 %v2709
    %v2776 = vunpack.c.l.b16 %v2710
    %v2777 = vunpack.c.h.b16 %v2710
    %v2778 = vunpack.c.l.b16 %v2711
    %v2779 = vunpack.c.h.b16 %v2711
    %v2780 = vunpack.c.l.b16 %v2712
    %v2781 = vunpack.c.h.b16 %v2712
    %v2782 = vunpack.c.l.b16 %v2713
    %v2783 = vunpack.c.h.b16 %v2713
    %v2784 = vunpack.c.l.b16 %v2714
    %v2785 = vunpack.c.h.b16 %v2714
    %v2786 = vunpack.c.l.b16 %v2715
    %v2787 = vunpack.c.h.b16 %v2715
    %v2788 = vunpack.c.l.b16 %v2716
    %v2789 = vunpack.c.h.b16 %v2716
    %v2790 = vunpack.c.l.b16 %v2717
    %v2791 = vunpack.c.h.b16 %v2717
    %v2792 = vunpack.c.l.b16 %v2718
    %v2793 = vunpack.c.h.b16 %v2718
    %v2794 = vunpack.c.l.b16 %v2719
    %v2795 = vunpack.c.h.b16 %v2719
    %v2796 = vunpack.c.l.b16 %v2720
    %v2797 = vunpack.c.h.b16 %v2720
    %v2798 = vunpack.c.l.b16 %v2721
    %v2799 = vunpack.c.h.b16 %v2721
    %v2800 = vunpack.c.l.b16 %v2722
    %v2801 = vunpack.c.h.b16 %v2722
    %v2802 = vunpack.c.l.b16 %v2723
    %v2803 = vunpack.c.h.b16 %v2723
    %v2804 = vunpack.c.l.b16 %v2724
    %v2805 = vunpack.c.h.b16 %v2724
    %v2806 = vunpack.c.l.b16 %v2725
    %v2807 = vunpack.c.h.b16 %v2725
    %v2808 = vunpack.c.l.b16 %v2726
    %v2809 = vunpack.c.h.b16 %v2726
    %v2810 = vunpack.c.l.b16 %v2727
    %v2811 = vunpack.c.h.b16 %v2727
    %v2812 = vunpack.c.l.b16 %v2728
    %v2813 = vunpack.c.h.b16 %v2728
    %v2814 = vunpack.c.l.b16 %v2729
    %v2815 = vunpack.c.h.b16 %v2729
    %v2816 = vunpack.c.l.b16 %v2730
    %v2817 = vunpack.c.h.b16 %v2730
    %v2818 = vunpack.c.l.b16 %v2731
    %v2819 = vunpack.c.h.b16 %v2731
    %v2820 = vunpack.c.l.b16 %v2732
    %v2821 = vunpack.c.h.b16 %v2732
    %v2822 = vunpack.c.l.b16 %v2733
    %v2823 = vunpack.c.h.b16 %v2733
    %v2824 = vunpack.c.l.b16 %v2734
    %v2825 = vunpack.c.h.b16 %v2734
    %v2826 = vunpack.c.l.b16 %v2735
    %v2827 = vunpack.c.h.b16 %v2735
    %v2828 = vunpack.c.l.b16 %v2736
    %v2829 = vunpack.c.h.b16 %v2736
    %v2830 = vunpack.c.l.b16 %v2737
    %v2831 = vunpack.c.h.b16 %v2737
    %v2832 = vunpack.c.l.b16 %v2738
    %v2833 = vunpack.c.h.b16 %v2738
    %v2834 = vunpack.c.l.b16 %v2739
    %v2835 = vunpack.c.h.b16 %v2739
    %v2836 = vpack.c.b16 %v2776, %v2772
    %v2837 = vpack.c.b16 %v2777, %v2773
    %v2838 = vpack.c.b16 %v2778, %v2774
    %v2839 = vpack.c.b16 %v2779, %v2775
    %v2840 = vpack.c.b16 %v2784, %v2780
    %v2841 = vpack.c.b16 %v2785, %v2781
    %v2842 = vpack.c.b16 %v2786, %v2782
    %v2843 = vpack.c.b16 %v2787, %v2783
    %v2844 = vpack.c.b16 %v2792, %v2788
    %v2845 = vpack.c.b16 %v2793, %v2789
    %v2846 = vpack.c.b16 %v2794, %v2790
    %v2847 = vpack.c.b16 %v2795, %v2791
    %v2848 = vpack.c.b16 %v2800, %v2796
    %v2849 = vpack.c.b16 %v2801, %v2797
    %v2850 = vpack.c.b16 %v2802, %v2798
    %v2851 = vpack.c.b16 %v2803, %v2799
    %v2852 = vpack.c.b16 %v2808, %v2804
    %v2853 = vpack.c.b16 %v2809, %v2805
    %v2854 = vpack.c.b16 %v2810, %v2806
    %v2855 = vpack.c.b16 %v2811, %v2807
    %v2856 = vpack.c.b16 %v2816, %v2812
    %v2857 = vpack.c.b16 %v2817, %v2813
    %v2858 = vpack.c.b16 %v2818, %v2814
    %v2859 = vpack.c.b16 %v2819, %v2815
    %v2860 = vpack.c.b16 %v2824, %v2820
    %v2861 = vpack.c.b16 %v2825, %v2821
    %v2862 = vpack.c.b16 %v2826, %v2822
    %v2863 = vpack.c.b16 %v2827, %v2823
    %v2864 = vpack.c.b16 %v2832, %v2828
    %v2865 = vpack.c.b16 %v2833, %v2829
    %v2866 = vpack.c.b16 %v2834, %v2830
    %v2867 = vpack.c.b16 %v2835, %v2831
    %2900 = vmatpush.bf16.msra.mxu0 %v2864
    %2901 = vmatpush.bf16.msra.mxu0 %v2860
    %2902 = vmatpush.bf16.msra.mxu0 %v2856
    %2903 = vmatpush.bf16.msra.mxu0 %v2852
    %2904 = vmatpush.bf16.msra.mxu0 %v2848
    %2905 = vmatpush.bf16.msra.mxu0 %v2844
    %2906 = vmatpush.bf16.msra.mxu0 %v2840
    %2907 = vmatpush.bf16.msra.mxu0 %v2836
    %2908 = vmatmul.bf16.gmra.mxu0 %v2707
    %v2909 = vpop.f32.mrf.mxu0
    %v2910 = vadd.f32 0.0, %v2909
    %v2911 = vpop.f32.mrf.mxu0
    %2912 = vdwg.mxu0
    %2913 = vmatpush.bf16.msra.mxu0 %v2865
    %2914 = vmatpush.bf16.msra.mxu0 %v2861
    %2915 = vmatpush.bf16.msra.mxu0 %v2857
    %2916 = vmatpush.bf16.msra.mxu0 %v2853
    %2917 = vmatpush.bf16.msra.mxu0 %v2849
    %2918 = vmatpush.bf16.msra.mxu0 %v2845
    %2919 = vmatpush.bf16.msra.mxu0 %v2841
    %2920 = vmatpush.bf16.msra.mxu0 %v2837
    %2921 = vmatmul.bf16.gmra.mxu0 %v2707
    %v2922 = vpop.f32.mrf.mxu0
    %v2923 = vadd.f32 0.0, %v2922
    %v2924 = vpop.f32.mrf.mxu0
    %2925 = vdwg.mxu0
    %2926 = vmatpush.bf16.msra.mxu0 %v2866
    %2927 = vmatpush.bf16.msra.mxu0 %v2862
    %2928 = vmatpush.bf16.msra.mxu0 %v2858
    %2929 = vmatpush.bf16.msra.mxu0 %v2854
    %2930 = vmatpush.bf16.msra.mxu0 %v2850
    %2931 = vmatpush.bf16.msra.mxu0 %v2846
    %2932 = vmatpush.bf16.msra.mxu0 %v2842
    %2933 = vmatpush.bf16.msra.mxu0 %v2838
    %2934 = vmatmul.bf16.gmra.mxu0 %v2707
    %v2935 = vpop.f32.mrf.mxu0
    %v2936 = vadd.f32 0.0, %v2935
    %v2937 = vpop.f32.mrf.mxu0
    %2938 = vdwg.mxu0
    %2939 = vmatpush.bf16.msra.mxu0 %v2867
    %2940 = vmatpush.bf16.msra.mxu0 %v2863
    %2941 = vmatpush.bf16.msra.mxu0 %v2859
    %2942 = vmatpush.bf16.msra.mxu0 %v2855
    %2943 = vmatpush.bf16.msra.mxu0 %v2851
    %2944 = vmatpush.bf16.msra.mxu0 %v2847
    %2945 = vmatpush.bf16.msra.mxu0 %v2843
    %2946 = vmatpush.bf16.msra.mxu0 %v2839
    %2947 = vmatmul.bf16.gmra.mxu0 %v2707
    %v2948 = vpop.f32.mrf.mxu0
    %v2949 = vadd.f32 0.0, %v2948
    %v2950 = vpop.f32.mrf.mxu0
    %2951 = vdwg.mxu0
    %s2952 = smul.u32 7, 4
    %s2953 = smul.addr %s2952, 8
    %s2954 = scalar_lea.vmem [#allocation2], %s2953
    %v2955 = vld [vmem:[%s2954] sm:$0xff]
    %v2956 = vld [vmem:[%s2954 + $0x8] sm:$0xff]
    %v2957 = vld [vmem:[%s2954 + $0x10] sm:$0xff]
    %v2958 = vld [vmem:[%s2954 + $0x18] sm:$0xff]
    %v2959 = vadd.f32 %v2955, %v2910
    %v2960 = vadd.f32 %v2956, %v2923
    %v2961 = vadd.f32 %v2957, %v2936
    %v2962 = vadd.f32 %v2958, %v2949
    %v2963 = vxor.u32 %v2959, 2147483648
    %v2964 = vmul.f32 %v2963, 1.442695
    %v2965 = vpow.pop %v2964
    %v2966 = vadd.f32 %v2965, 1.0
    %v2967 = vrcp.pop %v2966
    %v2968 = vmul.f32 %v2966, %v2967
    %v2969 = vsub.f32 1.0, %v2968
    %v2970 = vmul.f32 %v2967, %v2969
    %v2971 = vadd.f32 %v2967, %v2970
    %vm2972 = vweird.f32 %v2966
    %vm2973 = vweird.f32 %v2967
    %vm2974 = vmor %vm2972, %vm2973
    %v2975 = vsel %vm2974, %v2967, %v2971
    %v2976 = vand.u32 2147483647, %v2966
    %vm2977 = vcmp.eq.f32.partialorder %v2976, 8.507059e+37
    %v2978 = vand.u32 %v2966, 2147483648
    %v2979 = vor.u32 1.1754944e-38, %v2978
    %v2980 = vsel %vm2977, %v2979, %v2975
    %v2981 = vmul.f32 1.0, %v2980
    %v2982 = vxor.u32 %v2960, 2147483648
    %v2983 = vmul.f32 %v2982, 1.442695
    %v2984 = vpow.pop %v2983
    %v2985 = vadd.f32 %v2984, 1.0
    %v2986 = vrcp.pop %v2985
    %v2987 = vmul.f32 %v2985, %v2986
    %v2988 = vsub.f32 1.0, %v2987
    %v2989 = vmul.f32 %v2986, %v2988
    %v2990 = vadd.f32 %v2986, %v2989
    %vm2991 = vweird.f32 %v2985
    %vm2992 = vweird.f32 %v2986
    %vm2993 = vmor %vm2991, %vm2992
    %v2994 = vsel %vm2993, %v2986, %v2990
    %v2995 = vand.u32 2147483647, %v2985
    %vm2996 = vcmp.eq.f32.partialorder %v2995, 8.507059e+37
    %v2997 = vand.u32 %v2985, 2147483648
    %v2998 = vor.u32 1.1754944e-38, %v2997
    %v2999 = vsel %vm2996, %v2998, %v2994
    %v3000 = vmul.f32 1.0, %v2999
    %v3001 = vtanh.pop %v2961
    %v3002 = vxor.u32 %v2962, 2147483648
    %v3003 = vmul.f32 %v3002, 1.442695
    %v3004 = vpow.pop %v3003
    %v3005 = vadd.f32 %v3004, 1.0
    %v3006 = vrcp.pop %v3005
    %v3007 = vmul.f32 %v3005, %v3006
    %v3008 = vsub.f32 1.0, %v3007
    %v3009 = vmul.f32 %v3006, %v3008
    %v3010 = vadd.f32 %v3006, %v3009
    %vm3011 = vweird.f32 %v3005
    %vm3012 = vweird.f32 %v3006
    %vm3013 = vmor %vm3011, %vm3012
    %v3014 = vsel %vm3013, %v3006, %v3010
    %v3015 = vand.u32 2147483647, %v3005
    %vm3016 = vcmp.eq.f32.partialorder %v3015, 8.507059e+37
    %v3017 = vand.u32 %v3005, 2147483648
    %v3018 = vor.u32 1.1754944e-38, %v3017
    %v3019 = vsel %vm3016, %v3018, %v3014
    %v3020 = vmul.f32 1.0, %v3019
    %v3021 = vmul.f32 %v3000, %v2702
    %v3022 = vmul.f32 %v2981, %v3001
    %v3023 = vadd.f32 %v3021, %v3022
    %v3024 = vtanh.pop %v3023
    %v3025 = vmul.f32 %v3020, %v3024
    %s3026 = scalar_lea.vmem [#allocation11], 56
    %3027 = vst [vmem:[%s3026] sm:$0xff] %v3025
    // Predicated region
    $region34: #{tpu_custom_call.1} parent=1 // pred_check
      _
    $region35: #{tpu_custom_call.1} parent=1 // pred_check_branch
      %3029 = sbr.rel (0) target = $region37
    $region36: #{tpu_custom_call.1} parent=1 // pred_region
      %3031 = vsyncadd [#allocation5], 0
      %s3032 = sshll.u32 [#allocation11], 4
      %s3033 = int_to_ptr.vmem [resolvable:$true] %s3032
      %s3034 = sshll.u32 %s4, 4
      %s3035 = int_to_ptr.hbm [resolvable:$true] %s3034
      %3040 = dma.vmem_to_hbm [thread:$0]  %s3033, 1024, %s3035, [#allocation5], 128, 128, 8
    $region37: #{tpu_custom_call.1} parent=1 // pred_fallthru
      _
    // Predicated region
    $region38: #{tpu_custom_call.1} parent=1 // pred_check
      _
    $region39: #{tpu_custom_call.1} parent=1 // pred_check_branch
      %3042 = sbr.rel (0) target = $region41
    $region40: #{tpu_custom_call.1} parent=1 // pred_region
      %3044 = dma.done [#allocation5], 1024
    $region41: #{tpu_custom_call.1} parent=1 // pred_fallthru
      _
    %3045 = vsyncpa [#allocation4], 1
    %3046 = vsyncpa [#allocation7], 1
    %3047 = vsyncpa [#allocation10], 1
    %3048 = vsyncpa [#allocation5], 1

</llo_original>
